<compile_context>
chip_gen: v7x
topology: tpu7x:2x2x1
jax: 0.10.0
libtpu: 0.0.40
codegen_flags: <defaults>
</compile_context>

<pallas_src>
import functools

import jax
import jax.numpy as jnp
from jax import lax
from jax.experimental import pallas as pl
from jax.experimental.pallas import tpu as pltpu


def _round_up(x, m):
    return ((x + m - 1) // m) * m


# ---------------------------------------------------------------------------
# Pallas kernels
# ---------------------------------------------------------------------------
def _matmul_bias_act_kernel(x_ref, w_ref, b_ref, o_ref, acc_ref, *, relu, n_k):
    """Tiled  out = act(x @ w + b)  with K as a reduction grid axis."""
    k = pl.program_id(1)

    @pl.when(k == 0)
    def _init():
        acc_ref[...] = jnp.zeros_like(acc_ref)

    acc_ref[...] += jnp.dot(x_ref[...], w_ref[...],
                            preferred_element_type=jnp.float32)

    @pl.when(k == n_k - 1)
    def _finalize():
        y = acc_ref[...] + b_ref[...]          # (tm, N) + (1, N)
        if relu:
            y = jnp.maximum(y, 0.0)
        o_ref[...] = y.astype(o_ref.dtype)


def _fc_head_kernel(x_ref, w1_ref, b1_ref, w2_ref, b2_ref, o_ref, acc_ref, *, n_k):
    """Fused FC head: q = (relu(x @ w1 + b1)) @ w2 + b2.

    fc2 is an epilogue on the resident fc1 accumulator tile, so the hidden
    (tm, 512) activation never leaves VMEM.
    """
    k = pl.program_id(1)

    @pl.when(k == 0)
    def _init():
        acc_ref[...] = jnp.zeros_like(acc_ref)

    acc_ref[...] += jnp.dot(x_ref[...], w1_ref[...],
                            preferred_element_type=jnp.float32)

    @pl.when(k == n_k - 1)
    def _finalize():
        h = jnp.maximum(acc_ref[...] + b1_ref[...], 0.0)
        q = jnp.dot(h.astype(w2_ref.dtype), w2_ref[...],
                    preferred_element_type=jnp.float32) + b2_ref[...]
        o_ref[...] = q.astype(o_ref.dtype)


# ---------------------------------------------------------------------------
# Tiled pallas_call wrappers
# ---------------------------------------------------------------------------
_TM = 256        # M tile (rows); multiple of 16 (bf16 sublane packing)
_TK_MAX = 2048   # keep K whole (single reduction step) below this
_TK = 512        # reduction tile when K is large (multiple of 128)


def _pad_mk(x, w, tm_max, tk_max):
    """Pad x:(M,K) and w:(K,N) so the grid tiles divide evenly."""
    M, K = x.shape
    tm = min(tm_max, _round_up(M, 16))
    m_pad = _round_up(M, tm)
    if K <= tk_max:
        tk, k_pad = K, K
    else:
        tk = _TK
        k_pad = _round_up(K, tk)
    if (m_pad, k_pad) != (M, K):
        x = jnp.pad(x, ((0, m_pad - M), (0, k_pad - K)))
    if k_pad != K:
        w = jnp.pad(w, ((0, k_pad - K), (0, 0)))
    return x, w, tm, tk, m_pad // tm, k_pad // tk


def matmul_bias_act(x, w, b, *, relu, out_dtype):
    """x:(M,K) bf16, w:(K,N) bf16, b:(1,N) f32 -> (M,N) out_dtype."""
    M = x.shape[0]
    N = w.shape[1]
    x, w, tm, tk, n_m, n_k = _pad_mk(x, w, _TM, _TK_MAX)
    out = pl.pallas_call(
        functools.partial(_matmul_bias_act_kernel, relu=relu, n_k=n_k),
        out_shape=jax.ShapeDtypeStruct((n_m * tm, N), out_dtype),
        grid=(n_m, n_k),
        in_specs=[
            pl.BlockSpec((tm, tk), lambda i, k: (i, k)),
            pl.BlockSpec((tk, N), lambda i, k: (k, 0)),
            pl.BlockSpec((1, N), lambda i, k: (0, 0)),
        ],
        out_specs=pl.BlockSpec((tm, N), lambda i, k: (i, 0)),
        scratch_shapes=[pltpu.VMEM((tm, N), jnp.float32)],
        compiler_params=pltpu.CompilerParams(
            dimension_semantics=("parallel", "arbitrary")),
    )(x, w, b)
    return out[:M] if out.shape[0] != M else out


def fc_head(x, w1, b1, w2, b2, *, out_dtype=jnp.float32):
    """Fused fc1(+ReLU)+fc2: x:(M,K) bf16 -> (M, n_actions) out_dtype."""
    M = x.shape[0]
    N1, N2 = w1.shape[1], w2.shape[1]
    # Lane-dense output: pad fc2 columns to a multiple of 128 so the final
    # store is an unmasked full-lane `vst`; slice back afterwards (tiny).
    n2_pad = _round_up(N2, 128)
    if n2_pad != N2:
        w2 = jnp.pad(w2, ((0, 0), (0, n2_pad - N2)))
        b2 = jnp.pad(b2, ((0, 0), (0, n2_pad - N2)))
    x, w1, tm, tk, n_m, n_k = _pad_mk(x, w1, _TM, _TK_MAX)
    out = pl.pallas_call(
        functools.partial(_fc_head_kernel, n_k=n_k),
        out_shape=jax.ShapeDtypeStruct((n_m * tm, n2_pad), out_dtype),
        grid=(n_m, n_k),
        in_specs=[
            pl.BlockSpec((tm, tk), lambda i, k: (i, k)),
            pl.BlockSpec((tk, N1), lambda i, k: (k, 0)),
            pl.BlockSpec((1, N1), lambda i, k: (0, 0)),
            pl.BlockSpec((N1, n2_pad), lambda i, k: (0, 0)),
            pl.BlockSpec((1, n2_pad), lambda i, k: (0, 0)),
        ],
        out_specs=pl.BlockSpec((tm, n2_pad), lambda i, k: (i, 0)),
        scratch_shapes=[pltpu.VMEM((tm, N1), jnp.float32)],
        compiler_params=pltpu.CompilerParams(
            dimension_semantics=("parallel", "arbitrary")),
    )(x, w1, b1, w2, b2)
    return out[:M, :N2]


# ---------------------------------------------------------------------------
# Conv2d (valid padding) = fused patch extraction + tiled Pallas matmul
# ---------------------------------------------------------------------------
def conv2d_relu(x_nhwc, w_ihwo, b, stride):
    """x:(N,H,W,Cin) bf16, w:(Cin,KH,KW,Cout) bf16, b:(1,Cout) f32."""
    cin, kh, kw, cout = w_ihwo.shape
    n = x_nhwc.shape[0]
    # Single fused XLA op; feature dim is channel-major: (cin, kh, kw).
    # TODO(synk): move patch extraction fully in-kernel (strided-window DMA)
    # to also remove the kh*kw-duplicated patches tensor from HBM.
    patches = lax.conv_general_dilated_patches(
        x_nhwc, (kh, kw), (stride, stride), "VALID",
        dimension_numbers=("NHWC", "HWIO", "NHWC"))
    _, oh, ow, kdim = patches.shape          # kdim == cin*kh*kw
    cols = patches.reshape(n * oh * ow, kdim)
    w2d = w_ihwo.reshape(cin * kh * kw, cout)
    out = matmul_bias_act(cols, w2d, b, relu=True, out_dtype=jnp.bfloat16)
    return out.reshape(n, oh, ow, cout)


# ---------------------------------------------------------------------------
# DQN parameters / forward
# ---------------------------------------------------------------------------
def _conv_out_hw(h, w):
    h = (h - 8) // 4 + 1; w = (w - 8) // 4 + 1   # Conv2d(k=8, s=4)
    h = (h - 4) // 2 + 1; w = (w - 4) // 2 + 1   # Conv2d(k=4, s=2)
    h = (h - 3) // 1 + 1; w = (w - 3) // 1 + 1   # Conv2d(k=3, s=1)
    return h, w


def init_dqn_params(key, input_shape, n_actions, *, compute_dtype=jnp.bfloat16):
    """Conv weights: (Cin,KH,KW,Cout) layout (matches patch feature order).
    fc1 rows are stored in NHWC-flatten order so no runtime transpose is
    needed before the FC head."""
    c, h, w = input_shape
    ks = jax.random.split(key, 10)

    def u(k, shape, fan_in):
        bound = 1.0 / jnp.sqrt(jnp.float32(fan_in))
        return jax.random.uniform(k, shape, jnp.float32, -bound, bound)

    oh, ow = _conv_out_hw(h, w)
    conv_out_size = 64 * oh * ow
    return {
        "w1": u(ks[0], (c, 8, 8, 32), 8 * 8 * c).astype(compute_dtype),
        "b1": u(ks[1], (1, 32), 8 * 8 * c),
        "w2": u(ks[2], (32, 4, 4, 64), 4 * 4 * 32).astype(compute_dtype),
        "b2": u(ks[3], (1, 64), 4 * 4 * 32),
        "w3": u(ks[4], (64, 3, 3, 64), 3 * 3 * 64).astype(compute_dtype),
        "b3": u(ks[5], (1, 64), 3 * 3 * 64),
        "fw1": u(ks[6], (conv_out_size, 512), conv_out_size).astype(compute_dtype),
        "fb1": u(ks[7], (1, 512), conv_out_size),
        "fw2": u(ks[8], (512, n_actions), 512).astype(compute_dtype),
        "fb2": u(ks[9], (1, n_actions), 512),
    }


def dqn_forward(params, x_nchw):
    x = jnp.transpose(x_nchw, (0, 2, 3, 1)).astype(jnp.bfloat16)   # NCHW -> NHWC
    x = conv2d_relu(x, params["w1"], params["b1"], stride=4)
    x = conv2d_relu(x, params["w2"], params["b2"], stride=2)
    x = conv2d_relu(x, params["w3"], params["b3"], stride=1)
    x = x.reshape(x.shape[0], -1)        # NHWC flatten (fc1 rows match this order)
    return fc_head(x, params["fw1"], params["fb1"], params["fw2"], params["fb2"])


def dqn_forward_reference(params, x_nchw):
    """Pure-JAX reference with identical bf16/f32-accum numerics (validation)."""
    x = jnp.transpose(x_nchw, (0, 2, 3, 1)).astype(jnp.bfloat16)
    for i, s in (("1", 4), ("2", 2), ("3", 1)):
        w_hwio = jnp.transpose(params[f"w{i}"], (1, 2, 0, 3))   # IHWO -> HWIO
        y = lax.conv_general_dilated(
            x, w_hwio, (s, s), "VALID",
            dimension_numbers=("NHWC", "HWIO", "NHWC"),
            preferred_element_type=jnp.float32)
        x = jnp.maximum(y + params[f"b{i}"], 0.0).astype(jnp.bfloat16)
    h = x.reshape(x.shape[0], -1)
    h1 = jnp.maximum(
        jnp.dot(h, params["fw1"], preferred_element_type=jnp.float32)
        + params["fb1"], 0.0)
    return jnp.dot(h1.astype(jnp.bfloat16), params["fw2"],
                   preferred_element_type=jnp.float32) + params["fb2"]


if __name__ == "__main__":
    key = jax.random.PRNGKey(0)
    k_param, k_x = jax.random.split(key)

    # Smallest shapes keeping the conv stack valid: 36x36 -> 8 -> 3 -> 1.
    B, C, H, W = 2, 4, 36, 36
    n_actions = 6

    params = init_dqn_params(k_param, (C, H, W), n_actions)
    x = jax.random.normal(k_x, (B, C, H, W), jnp.float32)

    fwd = jax.jit(dqn_forward)
    q_values = fwd(params, x)
    jax.block_until_ready(q_values)

    assert q_values.shape == (B, n_actions), q_values.shape
    assert q_values.dtype == jnp.float32, q_values.dtype

    # Validate against the pure-JAX reference (same bf16 casts / f32 accum).
    q_ref = jax.jit(dqn_forward_reference)(params, x)
    jax.block_until_ready(q_ref)
    max_err = float(jnp.max(jnp.abs(q_values - q_ref)))
    assert max_err < 5e-2, f"mismatch vs reference: {max_err}"

    print("KERNEL_OK")
</pallas_src>

<mosaic_0001>
module attributes {stable_mosaic.version = 11 : i64} {
  func.func @_matmul_bias_act_kernel(%arg0: i32, %arg1: i32, %arg2: memref<128x256xbf16, #tpu.memory_space<vmem>>, %arg3: memref<256x32xbf16, #tpu.memory_space<vmem>>, %arg4: memref<1x32xf32, #tpu.memory_space<vmem>>, %arg5: memref<128x32xbf16, #tpu.memory_space<vmem>>, %arg6: memref<128x32xf32, #tpu.memory_space<vmem>>) attributes {dimension_semantics = [#tpu.dimension_semantics<parallel>, #tpu.dimension_semantics<arbitrary>], iteration_bounds = array<i64: 1, 1>, scalar_prefetch = 0 : i64, scratch_operands = 1 : i64, tpu.core_type = #tpu.core_type<tc>, window_params = [{transform_indices = @transform_0, window_bounds = array<i64: 128, 256>}, {transform_indices = @transform_1, window_bounds = array<i64: 256, 32>}, {pipeline_mode = #tpu.pipeline_mode<synchronous>, transform_indices = @transform_2, window_bounds = array<i64: 1, 32>}, {transform_indices = @transform_3, window_bounds = array<i64: 128, 32>}]} {
    %c0_i32 = arith.constant 0 : i32
    %0 = arith.cmpi eq, %arg1, %c0_i32 : i32
    %1 = arith.extui %0 : i1 to i32
    %c0_i32_0 = arith.constant 0 : i32
    %2 = arith.cmpi ne, %1, %c0_i32_0 : i32
    scf.if %2 {
      %cst_10 = arith.constant 0.000000e+00 : f32
      %12 = vector.broadcast %cst_10 : f32 to vector<128x32xf32>
      %c0_11 = arith.constant 0 : index
      %c0_12 = arith.constant 0 : index
      %13 = vector.load %arg6[%c0_11, %c0_12] : memref<128x32xf32, #tpu.memory_space<vmem>>, vector<128x32xf32>
      tpu.vector_store %arg6[%c0_11, %c0_12], %12 {strides = array<i32>} : memref<128x32xf32, #tpu.memory_space<vmem>>, vector<128x32xf32>,
    } else {
    }
    %c0 = arith.constant 0 : index
    %c0_1 = arith.constant 0 : index
    %3 = vector.load %arg6[%c0, %c0_1] : memref<128x32xf32, #tpu.memory_space<vmem>>, vector<128x32xf32>
    %c0_2 = arith.constant 0 : index
    %c0_3 = arith.constant 0 : index
    %4 = vector.load %arg2[%c0_2, %c0_3] : memref<128x256xbf16, #tpu.memory_space<vmem>>, vector<128x256xbf16>
    %c0_4 = arith.constant 0 : index
    %c0_5 = arith.constant 0 : index
    %5 = vector.load %arg3[%c0_4, %c0_5] : memref<256x32xbf16, #tpu.memory_space<vmem>>, vector<256x32xbf16>
    %cst = arith.constant dense<0.000000e+00> : vector<128x32xf32>
    %6 = tpu.matmul %4, %5, %cst {dimension_numbers = #tpu.dot_dimension_numbers<[1], [0], [0], [1], [0, 0, 1, 1], [], []>} : vector<128x256xbf16>, vector<256x32xbf16>, vector<128x32xf32> -> vector<128x32xf32>
    %7 = arith.addf %3, %6 : vector<128x32xf32>
    %c0_6 = arith.constant 0 : index
    %c0_7 = arith.constant 0 : index
    %8 = vector.load %arg6[%c0_6, %c0_7] : memref<128x32xf32, #tpu.memory_space<vmem>>, vector<128x32xf32>
    tpu.vector_store %arg6[%c0_6, %c0_7], %7 {strides = array<i32>} : memref<128x32xf32, #tpu.memory_space<vmem>>, vector<128x32xf32>,
    %c0_i32_8 = arith.constant 0 : i32
    %9 = arith.cmpi eq, %arg1, %c0_i32_8 : i32
    %10 = arith.extui %9 : i1 to i32
    %c0_i32_9 = arith.constant 0 : i32
    %11 = arith.cmpi ne, %10, %c0_i32_9 : i32
    scf.if %11 {
      %c0_10 = arith.constant 0 : index
      %c0_11 = arith.constant 0 : index
      %12 = vector.load %arg6[%c0_10, %c0_11] : memref<128x32xf32, #tpu.memory_space<vmem>>, vector<128x32xf32>
      %c0_12 = arith.constant 0 : index
      %c0_13 = arith.constant 0 : index
      %13 = vector.load %arg4[%c0_12, %c0_13] : memref<1x32xf32, #tpu.memory_space<vmem>>, vector<1x32xf32>
      %14 = vector.broadcast %13 : vector<1x32xf32> to vector<128x32xf32>
      %15 = arith.addf %12, %14 : vector<128x32xf32>
      %cst_14 = arith.constant 0.000000e+00 : f32
      %16 = vector.broadcast %cst_14 : f32 to vector<128x32xf32>
      %17 = arith.maximumf %15, %16 : vector<128x32xf32>
      %18 = arith.truncf %17 : vector<128x32xf32> to vector<128x32xbf16>
      %c0_15 = arith.constant 0 : index
      %c0_16 = arith.constant 0 : index
      %19 = vector.load %arg5[%c0_15, %c0_16] : memref<128x32xbf16, #tpu.memory_space<vmem>>, vector<128x32xbf16>
      tpu.vector_store %arg5[%c0_15, %c0_16], %18 {strides = array<i32>} : memref<128x32xbf16, #tpu.memory_space<vmem>>, vector<128x32xbf16>,
    } else {
    }
    return
  }
  func.func @transform_0(%arg0: i32, %arg1: i32) -> (i32, i32) {
    %c0_i32 = arith.constant 0 : i32
    return %arg0, %arg1 : i32, i32
  }
  func.func @transform_1(%arg0: i32, %arg1: i32) -> (i32, i32) {
    %c0_i32 = arith.constant 0 : i32
    %c0_i32_0 = arith.constant 0 : i32
    return %arg1, %c0_i32 : i32, i32
  }
  func.func @transform_2(%arg0: i32, %arg1: i32) -> (i32, i32) {
    %c0_i32 = arith.constant 0 : i32
    %c0_i32_0 = arith.constant 0 : i32
    %c0_i32_1 = arith.constant 0 : i32
    return %c0_i32, %c0_i32_0 : i32, i32
  }
  func.func @transform_3(%arg0: i32, %arg1: i32) -> (i32, i32) {
    %c0_i32 = arith.constant 0 : i32
    %c0_i32_0 = arith.constant 0 : i32
    return %arg0, %c0_i32 : i32, i32
  }
}

module attributes {stable_mosaic.version = 11 : i64} {
  func.func @_matmul_bias_act_kernel(%arg0: i32, %arg1: i32, %arg2: memref<32x512xbf16, #tpu.memory_space<vmem>>, %arg3: memref<512x64xbf16, #tpu.memory_space<vmem>>, %arg4: memref<1x64xf32, #tpu.memory_space<vmem>>, %arg5: memref<32x64xbf16, #tpu.memory_space<vmem>>, %arg6: memref<32x64xf32, #tpu.memory_space<vmem>>) attributes {dimension_semantics = [#tpu.dimension_semantics<parallel>, #tpu.dimension_semantics<arbitrary>], iteration_bounds = array<i64: 1, 1>, scalar_prefetch = 0 : i64, scratch_operands = 1 : i64, tpu.core_type = #tpu.core_type<tc>, window_params = [{transform_indices = @transform_0, window_bounds = array<i64: 32, 512>}, {transform_indices = @transform_1, window_bounds = array<i64: 512, 64>}, {pipeline_mode = #tpu.pipeline_mode<synchronous>, transform_indices = @transform_2, window_bounds = array<i64: 1, 64>}, {transform_indices = @transform_3, window_bounds = array<i64: 32, 64>}]} {
    %c0_i32 = arith.constant 0 : i32
    %0 = arith.cmpi eq, %arg1, %c0_i32 : i32
    %1 = arith.extui %0 : i1 to i32
    %c0_i32_0 = arith.constant 0 : i32
    %2 = arith.cmpi ne, %1, %c0_i32_0 : i32
    scf.if %2 {
      %cst_10 = arith.constant 0.000000e+00 : f32
      %12 = vector.broadcast %cst_10 : f32 to vector<32x64xf32>
      %c0_11 = arith.constant 0 : index
      %c0_12 = arith.constant 0 : index
      %13 = vector.load %arg6[%c0_11, %c0_12] : memref<32x64xf32, #tpu.memory_space<vmem>>, vector<32x64xf32>
      tpu.vector_store %arg6[%c0_11, %c0_12], %12 {strides = array<i32>} : memref<32x64xf32, #tpu.memory_space<vmem>>, vector<32x64xf32>,
    } else {
    }
    %c0 = arith.constant 0 : index
    %c0_1 = arith.constant 0 : index
    %3 = vector.load %arg6[%c0, %c0_1] : memref<32x64xf32, #tpu.memory_space<vmem>>, vector<32x64xf32>
    %c0_2 = arith.constant 0 : index
    %c0_3 = arith.constant 0 : index
    %4 = vector.load %arg2[%c0_2, %c0_3] : memref<32x512xbf16, #tpu.memory_space<vmem>>, vector<32x512xbf16>
    %c0_4 = arith.constant 0 : index
    %c0_5 = arith.constant 0 : index
    %5 = vector.load %arg3[%c0_4, %c0_5] : memref<512x64xbf16, #tpu.memory_space<vmem>>, vector<512x64xbf16>
    %cst = arith.constant dense<0.000000e+00> : vector<32x64xf32>
    %6 = tpu.matmul %4, %5, %cst {dimension_numbers = #tpu.dot_dimension_numbers<[1], [0], [0], [1], [0, 0, 1, 1], [], []>} : vector<32x512xbf16>, vector<512x64xbf16>, vector<32x64xf32> -> vector<32x64xf32>
    %7 = arith.addf %3, %6 : vector<32x64xf32>
    %c0_6 = arith.constant 0 : index
    %c0_7 = arith.constant 0 : index
    %8 = vector.load %arg6[%c0_6, %c0_7] : memref<32x64xf32, #tpu.memory_space<vmem>>, vector<32x64xf32>
    tpu.vector_store %arg6[%c0_6, %c0_7], %7 {strides = array<i32>} : memref<32x64xf32, #tpu.memory_space<vmem>>, vector<32x64xf32>,
    %c0_i32_8 = arith.constant 0 : i32
    %9 = arith.cmpi eq, %arg1, %c0_i32_8 : i32
    %10 = arith.extui %9 : i1 to i32
    %c0_i32_9 = arith.constant 0 : i32
    %11 = arith.cmpi ne, %10, %c0_i32_9 : i32
    scf.if %11 {
      %c0_10 = arith.constant 0 : index
      %c0_11 = arith.constant 0 : index
      %12 = vector.load %arg6[%c0_10, %c0_11] : memref<32x64xf32, #tpu.memory_space<vmem>>, vector<32x64xf32>
      %c0_12 = arith.constant 0 : index
      %c0_13 = arith.constant 0 : index
      %13 = vector.load %arg4[%c0_12, %c0_13] : memref<1x64xf32, #tpu.memory_space<vmem>>, vector<1x64xf32>
      %14 = vector.broadcast %13 : vector<1x64xf32> to vector<32x64xf32>
      %15 = arith.addf %12, %14 : vector<32x64xf32>
      %cst_14 = arith.constant 0.000000e+00 : f32
      %16 = vector.broadcast %cst_14 : f32 to vector<32x64xf32>
      %17 = arith.maximumf %15, %16 : vector<32x64xf32>
      %18 = arith.truncf %17 : vector<32x64xf32> to vector<32x64xbf16>
      %c0_15 = arith.constant 0 : index
      %c0_16 = arith.constant 0 : index
      %19 = vector.load %arg5[%c0_15, %c0_16] : memref<32x64xbf16, #tpu.memory_space<vmem>>, vector<32x64xbf16>
      tpu.vector_store %arg5[%c0_15, %c0_16], %18 {strides = array<i32>} : memref<32x64xbf16, #tpu.memory_space<vmem>>, vector<32x64xbf16>,
    } else {
    }
    return
  }
  func.func @transform_0(%arg0: i32, %arg1: i32) -> (i32, i32) {
    %c0_i32 = arith.constant 0 : i32
    return %arg0, %arg1 : i32, i32
  }
  func.func @transform_1(%arg0: i32, %arg1: i32) -> (i32, i32) {
    %c0_i32 = arith.constant 0 : i32
    %c0_i32_0 = arith.constant 0 : i32
    return %arg1, %c0_i32 : i32, i32
  }
  func.func @transform_2(%arg0: i32, %arg1: i32) -> (i32, i32) {
    %c0_i32 = arith.constant 0 : i32
    %c0_i32_0 = arith.constant 0 : i32
    %c0_i32_1 = arith.constant 0 : i32
    return %c0_i32, %c0_i32_0 : i32, i32
  }
  func.func @transform_3(%arg0: i32, %arg1: i32) -> (i32, i32) {
    %c0_i32 = arith.constant 0 : i32
    %c0_i32_0 = arith.constant 0 : i32
    return %arg0, %c0_i32 : i32, i32
  }
}

module attributes {stable_mosaic.version = 11 : i64} {
  func.func @_matmul_bias_act_kernel(%arg0: i32, %arg1: i32, %arg2: memref<16x576xbf16, #tpu.memory_space<vmem>>, %arg3: memref<576x64xbf16, #tpu.memory_space<vmem>>, %arg4: memref<1x64xf32, #tpu.memory_space<vmem>>, %arg5: memref<16x64xbf16, #tpu.memory_space<vmem>>, %arg6: memref<16x64xf32, #tpu.memory_space<vmem>>) attributes {dimension_semantics = [#tpu.dimension_semantics<parallel>, #tpu.dimension_semantics<arbitrary>], iteration_bounds = array<i64: 1, 1>, scalar_prefetch = 0 : i64, scratch_operands = 1 : i64, tpu.core_type = #tpu.core_type<tc>, window_params = [{transform_indices = @transform_0, window_bounds = array<i64: 16, 576>}, {transform_indices = @transform_1, window_bounds = array<i64: 576, 64>}, {pipeline_mode = #tpu.pipeline_mode<synchronous>, transform_indices = @transform_2, window_bounds = array<i64: 1, 64>}, {transform_indices = @transform_3, window_bounds = array<i64: 16, 64>}]} {
    %c0_i32 = arith.constant 0 : i32
    %0 = arith.cmpi eq, %arg1, %c0_i32 : i32
    %1 = arith.extui %0 : i1 to i32
    %c0_i32_0 = arith.constant 0 : i32
    %2 = arith.cmpi ne, %1, %c0_i32_0 : i32
    scf.if %2 {
      %cst_10 = arith.constant 0.000000e+00 : f32
      %12 = vector.broadcast %cst_10 : f32 to vector<16x64xf32>
      %c0_11 = arith.constant 0 : index
      %c0_12 = arith.constant 0 : index
      %13 = vector.load %arg6[%c0_11, %c0_12] : memref<16x64xf32, #tpu.memory_space<vmem>>, vector<16x64xf32>
      tpu.vector_store %arg6[%c0_11, %c0_12], %12 {strides = array<i32>} : memref<16x64xf32, #tpu.memory_space<vmem>>, vector<16x64xf32>,
    } else {
    }
    %c0 = arith.constant 0 : index
    %c0_1 = arith.constant 0 : index
    %3 = vector.load %arg6[%c0, %c0_1] : memref<16x64xf32, #tpu.memory_space<vmem>>, vector<16x64xf32>
    %c0_2 = arith.constant 0 : index
    %c0_3 = arith.constant 0 : index
    %4 = vector.load %arg2[%c0_2, %c0_3] : memref<16x576xbf16, #tpu.memory_space<vmem>>, vector<16x576xbf16>
    %c0_4 = arith.constant 0 : index
    %c0_5 = arith.constant 0 : index
    %5 = vector.load %arg3[%c0_4, %c0_5] : memref<576x64xbf16, #tpu.memory_space<vmem>>, vector<576x64xbf16>
    %cst = arith.constant dense<0.000000e+00> : vector<16x64xf32>
    %6 = tpu.matmul %4, %5, %cst {dimension_numbers = #tpu.dot_dimension_numbers<[1], [0], [0], [1], [0, 0, 1, 1], [], []>} : vector<16x576xbf16>, vector<576x64xbf16>, vector<16x64xf32> -> vector<16x64xf32>
    %7 = arith.addf %3, %6 : vector<16x64xf32>
    %c0_6 = arith.constant 0 : index
    %c0_7 = arith.constant 0 : index
    %8 = vector.load %arg6[%c0_6, %c0_7] : memref<16x64xf32, #tpu.memory_space<vmem>>, vector<16x64xf32>
    tpu.vector_store %arg6[%c0_6, %c0_7], %7 {strides = array<i32>} : memref<16x64xf32, #tpu.memory_space<vmem>>, vector<16x64xf32>,
    %c0_i32_8 = arith.constant 0 : i32
    %9 = arith.cmpi eq, %arg1, %c0_i32_8 : i32
    %10 = arith.extui %9 : i1 to i32
    %c0_i32_9 = arith.constant 0 : i32
    %11 = arith.cmpi ne, %10, %c0_i32_9 : i32
    scf.if %11 {
      %c0_10 = arith.constant 0 : index
      %c0_11 = arith.constant 0 : index
      %12 = vector.load %arg6[%c0_10, %c0_11] : memref<16x64xf32, #tpu.memory_space<vmem>>, vector<16x64xf32>
      %c0_12 = arith.constant 0 : index
      %c0_13 = arith.constant 0 : index
      %13 = vector.load %arg4[%c0_12, %c0_13] : memref<1x64xf32, #tpu.memory_space<vmem>>, vector<1x64xf32>
      %14 = vector.broadcast %13 : vector<1x64xf32> to vector<16x64xf32>
      %15 = arith.addf %12, %14 : vector<16x64xf32>
      %cst_14 = arith.constant 0.000000e+00 : f32
      %16 = vector.broadcast %cst_14 : f32 to vector<16x64xf32>
      %17 = arith.maximumf %15, %16 : vector<16x64xf32>
      %18 = arith.truncf %17 : vector<16x64xf32> to vector<16x64xbf16>
      %c0_15 = arith.constant 0 : index
      %c0_16 = arith.constant 0 : index
      %19 = vector.load %arg5[%c0_15, %c0_16] : memref<16x64xbf16, #tpu.memory_space<vmem>>, vector<16x64xbf16>
      tpu.vector_store %arg5[%c0_15, %c0_16], %18 {strides = array<i32>} : memref<16x64xbf16, #tpu.memory_space<vmem>>, vector<16x64xbf16>,
    } else {
    }
    return
  }
  func.func @transform_0(%arg0: i32, %arg1: i32) -> (i32, i32) {
    %c0_i32 = arith.constant 0 : i32
    return %arg0, %arg1 : i32, i32
  }
  func.func @transform_1(%arg0: i32, %arg1: i32) -> (i32, i32) {
    %c0_i32 = arith.constant 0 : i32
    %c0_i32_0 = arith.constant 0 : i32
    return %arg1, %c0_i32 : i32, i32
  }
  func.func @transform_2(%arg0: i32, %arg1: i32) -> (i32, i32) {
    %c0_i32 = arith.constant 0 : i32
    %c0_i32_0 = arith.constant 0 : i32
    %c0_i32_1 = arith.constant 0 : i32
    return %c0_i32, %c0_i32_0 : i32, i32
  }
  func.func @transform_3(%arg0: i32, %arg1: i32) -> (i32, i32) {
    %c0_i32 = arith.constant 0 : i32
    %c0_i32_0 = arith.constant 0 : i32
    return %arg0, %c0_i32 : i32, i32
  }
}

module attributes {stable_mosaic.version = 11 : i64} {
  func.func @_fc_head_kernel(%arg0: i32, %arg1: i32, %arg2: memref<16x64xbf16, #tpu.memory_space<vmem>>, %arg3: memref<64x512xbf16, #tpu.memory_space<vmem>>, %arg4: memref<1x512xf32, #tpu.memory_space<vmem>>, %arg5: memref<512x128xbf16, #tpu.memory_space<vmem>>, %arg6: memref<1x128xf32, #tpu.memory_space<vmem>>, %arg7: memref<16x128xf32, #tpu.memory_space<vmem>>, %arg8: memref<16x512xf32, #tpu.memory_space<vmem>>) attributes {dimension_semantics = [#tpu.dimension_semantics<parallel>, #tpu.dimension_semantics<arbitrary>], iteration_bounds = array<i64: 1, 1>, scalar_prefetch = 0 : i64, scratch_operands = 1 : i64, tpu.core_type = #tpu.core_type<tc>, window_params = [{transform_indices = @transform_0, window_bounds = array<i64: 16, 64>}, {transform_indices = @transform_1, window_bounds = array<i64: 64, 512>}, {pipeline_mode = #tpu.pipeline_mode<synchronous>, transform_indices = @transform_2, window_bounds = array<i64: 1, 512>}, {pipeline_mode = #tpu.pipeline_mode<synchronous>, transform_indices = @transform_3, window_bounds = array<i64: 512, 128>}, {pipeline_mode = #tpu.pipeline_mode<synchronous>, transform_indices = @transform_4, window_bounds = array<i64: 1, 128>}, {transform_indices = @transform_5, window_bounds = array<i64: 16, 128>}]} {
    %c0_i32 = arith.constant 0 : i32
    %0 = arith.cmpi eq, %arg1, %c0_i32 : i32
    %1 = arith.extui %0 : i1 to i32
    %c0_i32_0 = arith.constant 0 : i32
    %2 = arith.cmpi ne, %1, %c0_i32_0 : i32
    scf.if %2 {
      %cst_10 = arith.constant 0.000000e+00 : f32
      %12 = vector.broadcast %cst_10 : f32 to vector<16x512xf32>
      %c0_11 = arith.constant 0 : index
      %c0_12 = arith.constant 0 : index
      %13 = vector.load %arg8[%c0_11, %c0_12] : memref<16x512xf32, #tpu.memory_space<vmem>>, vector<16x512xf32>
      tpu.vector_store %arg8[%c0_11, %c0_12], %12 {strides = array<i32>} : memref<16x512xf32, #tpu.memory_space<vmem>>, vector<16x512xf32>,
    } else {
    }
    %c0 = arith.constant 0 : index
    %c0_1 = arith.constant 0 : index
    %3 = vector.load %arg8[%c0, %c0_1] : memref<16x512xf32, #tpu.memory_space<vmem>>, vector<16x512xf32>
    %c0_2 = arith.constant 0 : index
    %c0_3 = arith.constant 0 : index
    %4 = vector.load %arg2[%c0_2, %c0_3] : memref<16x64xbf16, #tpu.memory_space<vmem>>, vector<16x64xbf16>
    %c0_4 = arith.constant 0 : index
    %c0_5 = arith.constant 0 : index
    %5 = vector.load %arg3[%c0_4, %c0_5] : memref<64x512xbf16, #tpu.memory_space<vmem>>, vector<64x512xbf16>
    %cst = arith.constant dense<0.000000e+00> : vector<16x512xf32>
    %6 = tpu.matmul %4, %5, %cst {dimension_numbers = #tpu.dot_dimension_numbers<[1], [0], [0], [1], [0, 0, 1, 1], [], []>} : vector<16x64xbf16>, vector<64x512xbf16>, vector<16x512xf32> -> vector<16x512xf32>
    %7 = arith.addf %3, %6 : vector<16x512xf32>
    %c0_6 = arith.constant 0 : index
    %c0_7 = arith.constant 0 : index
    %8 = vector.load %arg8[%c0_6, %c0_7] : memref<16x512xf32, #tpu.memory_space<vmem>>, vector<16x512xf32>
    tpu.vector_store %arg8[%c0_6, %c0_7], %7 {strides = array<i32>} : memref<16x512xf32, #tpu.memory_space<vmem>>, vector<16x512xf32>,
    %c0_i32_8 = arith.constant 0 : i32
    %9 = arith.cmpi eq, %arg1, %c0_i32_8 : i32
    %10 = arith.extui %9 : i1 to i32
    %c0_i32_9 = arith.constant 0 : i32
    %11 = arith.cmpi ne, %10, %c0_i32_9 : i32
    scf.if %11 {
      %c0_10 = arith.constant 0 : index
      %c0_11 = arith.constant 0 : index
      %12 = vector.load %arg8[%c0_10, %c0_11] : memref<16x512xf32, #tpu.memory_space<vmem>>, vector<16x512xf32>
      %c0_12 = arith.constant 0 : index
      %c0_13 = arith.constant 0 : index
      %13 = vector.load %arg4[%c0_12, %c0_13] : memref<1x512xf32, #tpu.memory_space<vmem>>, vector<1x512xf32>
      %14 = vector.broadcast %13 : vector<1x512xf32> to vector<16x512xf32>
      %15 = arith.addf %12, %14 : vector<16x512xf32>
      %cst_14 = arith.constant 0.000000e+00 : f32
      %16 = vector.broadcast %cst_14 : f32 to vector<16x512xf32>
      %17 = arith.maximumf %15, %16 : vector<16x512xf32>
      %18 = arith.truncf %17 : vector<16x512xf32> to vector<16x512xbf16>
      %c0_15 = arith.constant 0 : index
      %c0_16 = arith.constant 0 : index
      %19 = vector.load %arg5[%c0_15, %c0_16] : memref<512x128xbf16, #tpu.memory_space<vmem>>, vector<512x128xbf16>
      %cst_17 = arith.constant dense<0.000000e+00> : vector<16x128xf32>
      %20 = tpu.matmul %18, %19, %cst_17 {dimension_numbers = #tpu.dot_dimension_numbers<[1], [0], [0], [1], [0, 0, 1, 1], [], []>} : vector<16x512xbf16>, vector<512x128xbf16>, vector<16x128xf32> -> vector<16x128xf32>
      %c0_18 = arith.constant 0 : index
      %c0_19 = arith.constant 0 : index
      %21 = vector.load %arg6[%c0_18, %c0_19] : memref<1x128xf32, #tpu.memory_space<vmem>>, vector<1x128xf32>
      %22 = vector.broadcast %21 : vector<1x128xf32> to vector<16x128xf32>
      %23 = arith.addf %20, %22 : vector<16x128xf32>
      %c0_20 = arith.constant 0 : index
      %c0_21 = arith.constant 0 : index
      %24 = vector.load %arg7[%c0_20, %c0_21] : memref<16x128xf32, #tpu.memory_space<vmem>>, vector<16x128xf32>
      tpu.vector_store %arg7[%c0_20, %c0_21], %23 {strides = array<i32>} : memref<16x128xf32, #tpu.memory_space<vmem>>, vector<16x128xf32>,
    } else {
    }
    return
  }
  func.func @transform_0(%arg0: i32, %arg1: i32) -> (i32, i32) {
    %c0_i32 = arith.constant 0 : i32
    return %arg0, %arg1 : i32, i32
  }
  func.func @transform_1(%arg0: i32, %arg1: i32) -> (i32, i32) {
    %c0_i32 = arith.constant 0 : i32
    %c0_i32_0 = arith.constant 0 : i32
    return %arg1, %c0_i32 : i32, i32
  }
  func.func @transform_2(%arg0: i32, %arg1: i32) -> (i32, i32) {
    %c0_i32 = arith.constant 0 : i32
    %c0_i32_0 = arith.constant 0 : i32
    %c0_i32_1 = arith.constant 0 : i32
    return %c0_i32, %c0_i32_0 : i32, i32
  }
  func.func @transform_3(%arg0: i32, %arg1: i32) -> (i32, i32) {
    %c0_i32 = arith.constant 0 : i32
    %c0_i32_0 = arith.constant 0 : i32
    %c0_i32_1 = arith.constant 0 : i32
    return %c0_i32, %c0_i32_0 : i32, i32
  }
  func.func @transform_4(%arg0: i32, %arg1: i32) -> (i32, i32) {
    %c0_i32 = arith.constant 0 : i32
    %c0_i32_0 = arith.constant 0 : i32
    %c0_i32_1 = arith.constant 0 : i32
    return %c0_i32, %c0_i32_0 : i32, i32
  }
  func.func @transform_5(%arg0: i32, %arg1: i32) -> (i32, i32) {
    %c0_i32 = arith.constant 0 : i32
    %c0_i32_0 = arith.constant 0 : i32
    return %arg0, %c0_i32 : i32, i32
  }
}

</mosaic_0001>

<llo_original>
// kernel: dqn_forward.4
$region0: #{dqn_forward.4}
  #allocation0 [shape = 'u32[]', space=smem, size = 0x4, offset = 0x4, fixed_abs, tag = 'smem constant byte address 0x4 - core index']
  #allocation1 [shape = 'u32[144,128]{1,0:T(1,128)}', space=vmem, size = 0x12000, scoped, tag = 'internal scratch']
  #allocation2 [shape = 'f32[128,32]{1,0:T(8,128)}', space=vmem, size = 0x10000, scoped, tag = 'scratch operand']
  %s0 = inlined_call_operand.vmem [shape: bf16[128,256], index: 0, kind: input, shape index: {}]
  %s1 = inlined_call_operand.vmem [shape: bf16[256,32], index: 1, kind: input, shape index: {}]
  %s2 = inlined_call_operand.vmem [shape: f32[1,32], index: 2, kind: input, shape index: {}]
  %s3 = inlined_call_operand.vmem [shape: bf16[128,32], index: 3, kind: output, shape index: {}]
  %s4 = sld [smem:[#allocation0]]
  $region30: #{dqn_forward.4} parent=0
    _
  %s6 = ssub.s32 1, %s4
  %s7 = scalar_select 0, %s6, %s4
  // Predicated region
  $region2: #{dqn_forward.4} parent=0 // pred_check
    _
  $region3: #{dqn_forward.4} parent=0 // pred_check_branch
    %9 = sbr.rel (0) target = $region5
  $region4: #{dqn_forward.4} parent=0 // pred_region
    _
  $region5: #{dqn_forward.4} parent=0 // pred_fallthru
    _
  // Predicated region
  $region6: #{dqn_forward.4} parent=0 // pred_check
    _
  $region7: #{dqn_forward.4} parent=0 // pred_check_branch
    %11 = sbr.rel (0) target = $region9
  $region8: #{dqn_forward.4} parent=0 // pred_region
    _
  $region9: #{dqn_forward.4} parent=0 // pred_fallthru
    _
  // Predicated region
  $region10: #{dqn_forward.4} parent=0 // pred_check
    _
  $region11: #{dqn_forward.4} parent=0 // pred_check_branch
    %13 = sbr.rel (0) target = $region13
  $region12: #{dqn_forward.4} parent=0 // pred_region
    _
  $region13: #{dqn_forward.4} parent=0 // pred_fallthru
    _
  %p15 = scmp.eq.s32.totalorder 0, 0
  // Predicated region
  $region14: #{dqn_forward.4} parent=0 // pred_check
    %p16 = pneg %p15
  $region15: #{dqn_forward.4} parent=0 // pred_check_branch
    %18 = sbr.rel (%p16) target = $region17
  $region16: #{dqn_forward.4} parent=0 // pred_region
    %vm19 = vcmask 261120
    %20 = vst.msk [vmem:[#allocation2] sm:$0xff] %vm19, 0.0
    %21 = vst.msk [vmem:[#allocation2 + $0x8] sm:$0xff] %vm19, 0.0
    %22 = vst.msk [vmem:[#allocation2 + $0x10] sm:$0xff] %vm19, 0.0
    %23 = vst.msk [vmem:[#allocation2 + $0x18] sm:$0xff] %vm19, 0.0
    %24 = vst.msk [vmem:[#allocation2 + $0x20] sm:$0xff] %vm19, 0.0
    %25 = vst.msk [vmem:[#allocation2 + $0x28] sm:$0xff] %vm19, 0.0
    %26 = vst.msk [vmem:[#allocation2 + $0x30] sm:$0xff] %vm19, 0.0
    %27 = vst.msk [vmem:[#allocation2 + $0x38] sm:$0xff] %vm19, 0.0
    %28 = vst.msk [vmem:[#allocation2 + $0x40] sm:$0xff] %vm19, 0.0
    %29 = vst.msk [vmem:[#allocation2 + $0x48] sm:$0xff] %vm19, 0.0
    %30 = vst.msk [vmem:[#allocation2 + $0x50] sm:$0xff] %vm19, 0.0
    %31 = vst.msk [vmem:[#allocation2 + $0x58] sm:$0xff] %vm19, 0.0
    %32 = vst.msk [vmem:[#allocation2 + $0x60] sm:$0xff] %vm19, 0.0
    %33 = vst.msk [vmem:[#allocation2 + $0x68] sm:$0xff] %vm19, 0.0
    %34 = vst.msk [vmem:[#allocation2 + $0x70] sm:$0xff] %vm19, 0.0
    %35 = vst.msk [vmem:[#allocation2 + $0x78] sm:$0xff] %vm19, 0.0
  $region17: #{dqn_forward.4} parent=0 // pred_fallthru
    _
  %v36 = vld [vmem:[#allocation2] sm:$0xff]
  %v37 = vld [vmem:[#allocation2 + $0x8] sm:$0xff]
  %v38 = vld [vmem:[#allocation2 + $0x10] sm:$0xff]
  %v39 = vld [vmem:[#allocation2 + $0x18] sm:$0xff]
  %v40 = vld [vmem:[#allocation2 + $0x20] sm:$0xff]
  %v41 = vld [vmem:[#allocation2 + $0x28] sm:$0xff]
  %v42 = vld [vmem:[#allocation2 + $0x30] sm:$0xff]
  %v43 = vld [vmem:[#allocation2 + $0x38] sm:$0xff]
  %v44 = vld [vmem:[#allocation2 + $0x40] sm:$0xff]
  %v45 = vld [vmem:[#allocation2 + $0x48] sm:$0xff]
  %v46 = vld [vmem:[#allocation2 + $0x50] sm:$0xff]
  %v47 = vld [vmem:[#allocation2 + $0x58] sm:$0xff]
  %v48 = vld [vmem:[#allocation2 + $0x60] sm:$0xff]
  %v49 = vld [vmem:[#allocation2 + $0x68] sm:$0xff]
  %v50 = vld [vmem:[#allocation2 + $0x70] sm:$0xff]
  %v51 = vld [vmem:[#allocation2 + $0x78] sm:$0xff]
  %v52 = vld [vmem:[%s0] sm:$0xff]
  %v53 = vld [vmem:[%s0 + $0x8] sm:$0xff]
  %v54 = vld [vmem:[%s0 + $0x10] sm:$0xff]
  %v55 = vld [vmem:[%s0 + $0x18] sm:$0xff]
  %v56 = vld [vmem:[%s0 + $0x20] sm:$0xff]
  %v57 = vld [vmem:[%s0 + $0x28] sm:$0xff]
  %v58 = vld [vmem:[%s0 + $0x30] sm:$0xff]
  %v59 = vld [vmem:[%s0 + $0x38] sm:$0xff]
  %v60 = vld [vmem:[%s0 + $0x40] sm:$0xff]
  %v61 = vld [vmem:[%s0 + $0x48] sm:$0xff]
  %v62 = vld [vmem:[%s0 + $0x50] sm:$0xff]
  %v63 = vld [vmem:[%s0 + $0x58] sm:$0xff]
  %v64 = vld [vmem:[%s0 + $0x60] sm:$0xff]
  %v65 = vld [vmem:[%s0 + $0x68] sm:$0xff]
  %v66 = vld [vmem:[%s0 + $0x70] sm:$0xff]
  %v67 = vld [vmem:[%s0 + $0x78] sm:$0xff]
  %v68 = vld [vmem:[%s1] sm:$0xf]
  %v69 = vld [vmem:[%s1 + $0x4] sm:$0xf]
  %v70 = vld [vmem:[%s1 + $0x8] sm:$0xf]
  %v71 = vld [vmem:[%s1 + $0xc] sm:$0xf]
  %v72 = vld [vmem:[%s1 + $0x10] sm:$0xf]
  %v73 = vld [vmem:[%s1 + $0x14] sm:$0xf]
  %v74 = vld [vmem:[%s1 + $0x18] sm:$0xf]
  %v75 = vld [vmem:[%s1 + $0x1c] sm:$0xf]
  %v76 = vld [vmem:[%s1 + $0x20] sm:$0xf]
  %v77 = vld [vmem:[%s1 + $0x24] sm:$0xf]
  %v78 = vld [vmem:[%s1 + $0x28] sm:$0xf]
  %v79 = vld [vmem:[%s1 + $0x2c] sm:$0xf]
  %v80 = vld [vmem:[%s1 + $0x30] sm:$0xf]
  %v81 = vld [vmem:[%s1 + $0x34] sm:$0xf]
  %v82 = vld [vmem:[%s1 + $0x38] sm:$0xf]
  %v83 = vld [vmem:[%s1 + $0x3c] sm:$0xf]
  %v84 = vld [vmem:[%s1 + $0x40] sm:$0xf]
  %v85 = vld [vmem:[%s1 + $0x44] sm:$0xf]
  %v86 = vld [vmem:[%s1 + $0x48] sm:$0xf]
  %v87 = vld [vmem:[%s1 + $0x4c] sm:$0xf]
  %v88 = vld [vmem:[%s1 + $0x50] sm:$0xf]
  %v89 = vld [vmem:[%s1 + $0x54] sm:$0xf]
  %v90 = vld [vmem:[%s1 + $0x58] sm:$0xf]
  %v91 = vld [vmem:[%s1 + $0x5c] sm:$0xf]
  %v92 = vld [vmem:[%s1 + $0x60] sm:$0xf]
  %v93 = vld [vmem:[%s1 + $0x64] sm:$0xf]
  %v94 = vld [vmem:[%s1 + $0x68] sm:$0xf]
  %v95 = vld [vmem:[%s1 + $0x6c] sm:$0xf]
  %v96 = vld [vmem:[%s1 + $0x70] sm:$0xf]
  %v97 = vld [vmem:[%s1 + $0x74] sm:$0xf]
  %v98 = vld [vmem:[%s1 + $0x78] sm:$0xf]
  %v99 = vld [vmem:[%s1 + $0x7c] sm:$0xf]
  %v116 = vunpack.c.l.b16 %v52
  %v117 = vunpack.c.h.b16 %v52
  %v118 = vunpack.c.l.b16 %v53
  %v119 = vunpack.c.h.b16 %v53
  %v120 = vunpack.c.l.b16 %v54
  %v121 = vunpack.c.h.b16 %v54
  %v122 = vunpack.c.l.b16 %v55
  %v123 = vunpack.c.h.b16 %v55
  %v124 = vunpack.c.l.b16 %v56
  %v125 = vunpack.c.h.b16 %v56
  %v126 = vunpack.c.l.b16 %v57
  %v127 = vunpack.c.h.b16 %v57
  %v128 = vunpack.c.l.b16 %v58
  %v129 = vunpack.c.h.b16 %v58
  %v130 = vunpack.c.l.b16 %v59
  %v131 = vunpack.c.h.b16 %v59
  %v132 = vunpack.c.l.b16 %v60
  %v133 = vunpack.c.h.b16 %v60
  %v134 = vunpack.c.l.b16 %v61
  %v135 = vunpack.c.h.b16 %v61
  %v136 = vunpack.c.l.b16 %v62
  %v137 = vunpack.c.h.b16 %v62
  %v138 = vunpack.c.l.b16 %v63
  %v139 = vunpack.c.h.b16 %v63
  %v140 = vunpack.c.l.b16 %v64
  %v141 = vunpack.c.h.b16 %v64
  %v142 = vunpack.c.l.b16 %v65
  %v143 = vunpack.c.h.b16 %v65
  %v144 = vunpack.c.l.b16 %v66
  %v145 = vunpack.c.h.b16 %v66
  %v146 = vunpack.c.l.b16 %v67
  %v147 = vunpack.c.h.b16 %v67
  %v148 = vpack.c.b16 %v118, %v116
  %v149 = vpack.c.b16 %v119, %v117
  %v150 = vpack.c.b16 %v122, %v120
  %v151 = vpack.c.b16 %v123, %v121
  %v152 = vpack.c.b16 %v126, %v124
  %v153 = vpack.c.b16 %v127, %v125
  %v154 = vpack.c.b16 %v130, %v128
  %v155 = vpack.c.b16 %v131, %v129
  %v156 = vpack.c.b16 %v134, %v132
  %v157 = vpack.c.b16 %v135, %v133
  %v158 = vpack.c.b16 %v138, %v136
  %v159 = vpack.c.b16 %v139, %v137
  %v160 = vpack.c.b16 %v142, %v140
  %v161 = vpack.c.b16 %v143, %v141
  %v162 = vpack.c.b16 %v146, %v144
  %v163 = vpack.c.b16 %v147, %v145
  %v212 = vunpack.c.l.b16 %v68
  %v213 = vunpack.c.l.b16 %v69
  %v214 = vunpack.c.l.b16 %v70
  %v215 = vunpack.c.l.b16 %v71
  %v216 = vunpack.c.l.b16 %v72
  %v217 = vunpack.c.l.b16 %v73
  %v218 = vunpack.c.l.b16 %v74
  %v219 = vunpack.c.l.b16 %v75
  %v220 = vunpack.c.l.b16 %v76
  %v221 = vunpack.c.l.b16 %v77
  %v222 = vunpack.c.l.b16 %v78
  %v223 = vunpack.c.l.b16 %v79
  %v224 = vunpack.c.l.b16 %v80
  %v225 = vunpack.c.l.b16 %v81
  %v226 = vunpack.c.l.b16 %v82
  %v227 = vunpack.c.l.b16 %v83
  %v228 = vunpack.c.l.b16 %v84
  %v229 = vunpack.c.l.b16 %v85
  %v230 = vunpack.c.l.b16 %v86
  %v231 = vunpack.c.l.b16 %v87
  %v232 = vunpack.c.l.b16 %v88
  %v233 = vunpack.c.l.b16 %v89
  %v234 = vunpack.c.l.b16 %v90
  %v235 = vunpack.c.l.b16 %v91
  %v236 = vunpack.c.l.b16 %v92
  %v237 = vunpack.c.l.b16 %v93
  %v238 = vunpack.c.l.b16 %v94
  %v239 = vunpack.c.l.b16 %v95
  %v240 = vunpack.c.l.b16 %v96
  %v241 = vunpack.c.l.b16 %v97
  %v242 = vunpack.c.l.b16 %v98
  %v243 = vunpack.c.l.b16 %v99
  %v244 = vpack.c.b16 %v213, %v212
  %v245 = vpack.c.b16 %v215, %v214
  %v246 = vpack.c.b16 %v217, %v216
  %v247 = vpack.c.b16 %v219, %v218
  %v248 = vpack.c.b16 %v221, %v220
  %v249 = vpack.c.b16 %v223, %v222
  %v250 = vpack.c.b16 %v225, %v224
  %v251 = vpack.c.b16 %v227, %v226
  %v252 = vpack.c.b16 %v229, %v228
  %v253 = vpack.c.b16 %v231, %v230
  %v254 = vpack.c.b16 %v233, %v232
  %v255 = vpack.c.b16 %v235, %v234
  %v256 = vpack.c.b16 %v237, %v236
  %v257 = vpack.c.b16 %v239, %v238
  %v258 = vpack.c.b16 %v241, %v240
  %v259 = vpack.c.b16 %v243, %v242
  %276 = vmatprep.subr.bf16.mxu0 0
  %277 = vmatpush1.bf16.msra.mxu0 %v244
  %278 = vmatprep.subr.bf16.mxu0 0
  %279 = vmatpush1.bf16.msra.mxu0 %v245
  %280 = vmatprep.subr.bf16.mxu0 0
  %281 = vmatpush1.bf16.msra.mxu0 %v246
  %282 = vmatprep.subr.bf16.mxu0 0
  %283 = vmatpush1.bf16.msra.mxu0 %v247
  %284 = vmatprep.subr.bf16.mxu0 0
  %285 = vmatpush1.bf16.msra.mxu0 %v248
  %286 = vmatprep.subr.bf16.mxu0 0
  %287 = vmatpush1.bf16.msra.mxu0 %v249
  %288 = vmatprep.subr.bf16.mxu0 0
  %289 = vmatpush1.bf16.msra.mxu0 %v250
  %290 = vmatprep.subr.bf16.mxu0 0
  %291 = vmatpush1.bf16.msra.mxu0 %v251
  %292 = vmatprep.subr.bf16.mxu0 0
  %293 = vmatpush1.bf16.msra.mxu0 %v252
  %294 = vmatprep.subr.bf16.mxu0 0
  %295 = vmatpush1.bf16.msra.mxu0 %v253
  %296 = vmatprep.subr.bf16.mxu0 0
  %297 = vmatpush1.bf16.msra.mxu0 %v254
  %298 = vmatprep.subr.bf16.mxu0 0
  %299 = vmatpush1.bf16.msra.mxu0 %v255
  %300 = vmatprep.subr.bf16.mxu0 0
  %301 = vmatpush1.bf16.msra.mxu0 %v256
  %302 = vmatprep.subr.bf16.mxu0 0
  %303 = vmatpush1.bf16.msra.mxu0 %v257
  %304 = vmatprep.subr.bf16.mxu0 0
  %305 = vmatpush1.bf16.msra.mxu0 %v258
  %306 = vmatprep.subr.bf16.mxu0 0
  %307 = vmatpush1.bf16.msra.mxu0 %v259
  %308 = vmatprep.mubr.bf16.mxu0 %v149
  %309 = vmatmul.mubr.bf16.gmra.mrb[0].mxu0 %v148
  %v310 = vpop.f32.mrb[0].mxu0
  %v311 = vadd.f32 0.0, %v310
  %v312 = vpop.f32.mrb[0].mxu0
  %v313 = vpop.f32.mrb[0].mxu0
  %v314 = vadd.f32 0.0, %v313
  %v315 = vpop.f32.mrb[0].mxu0
  %316 = vmatprep.mubr.bf16.mxu0 %v151
  %317 = vmatmul.mubr.bf16.gmra.mrb[0].mxu0 %v150
  %v318 = vpop.f32.mrb[0].mxu0
  %v319 = vadd.f32 0.0, %v318
  %v320 = vpop.f32.mrb[0].mxu0
  %v321 = vpop.f32.mrb[0].mxu0
  %v322 = vadd.f32 0.0, %v321
  %v323 = vpop.f32.mrb[0].mxu0
  %324 = vmatprep.mubr.bf16.mxu0 %v153
  %325 = vmatmul.mubr.bf16.gmra.mrb[0].mxu0 %v152
  %v326 = vpop.f32.mrb[0].mxu0
  %v327 = vadd.f32 0.0, %v326
  %v328 = vpop.f32.mrb[0].mxu0
  %v329 = vpop.f32.mrb[0].mxu0
  %v330 = vadd.f32 0.0, %v329
  %v331 = vpop.f32.mrb[0].mxu0
  %332 = vmatprep.mubr.bf16.mxu0 %v155
  %333 = vmatmul.mubr.bf16.gmra.mrb[0].mxu0 %v154
  %v334 = vpop.f32.mrb[0].mxu0
  %v335 = vadd.f32 0.0, %v334
  %v336 = vpop.f32.mrb[0].mxu0
  %v337 = vpop.f32.mrb[0].mxu0
  %v338 = vadd.f32 0.0, %v337
  %v339 = vpop.f32.mrb[0].mxu0
  %340 = vmatprep.mubr.bf16.mxu0 %v157
  %341 = vmatmul.mubr.bf16.gmra.mrb[0].mxu0 %v156
  %v342 = vpop.f32.mrb[0].mxu0
  %v343 = vadd.f32 0.0, %v342
  %v344 = vpop.f32.mrb[0].mxu0
  %v345 = vpop.f32.mrb[0].mxu0
  %v346 = vadd.f32 0.0, %v345
  %v347 = vpop.f32.mrb[0].mxu0
  %348 = vmatprep.mubr.bf16.mxu0 %v159
  %349 = vmatmul.mubr.bf16.gmra.mrb[0].mxu0 %v158
  %v350 = vpop.f32.mrb[0].mxu0
  %v351 = vadd.f32 0.0, %v350
  %v352 = vpop.f32.mrb[0].mxu0
  %v353 = vpop.f32.mrb[0].mxu0
  %v354 = vadd.f32 0.0, %v353
  %v355 = vpop.f32.mrb[0].mxu0
  %356 = vmatprep.mubr.bf16.mxu0 %v161
  %357 = vmatmul.mubr.bf16.gmra.mrb[0].mxu0 %v160
  %v358 = vpop.f32.mrb[0].mxu0
  %v359 = vadd.f32 0.0, %v358
  %v360 = vpop.f32.mrb[0].mxu0
  %v361 = vpop.f32.mrb[0].mxu0
  %v362 = vadd.f32 0.0, %v361
  %v363 = vpop.f32.mrb[0].mxu0
  %364 = vmatprep.mubr.bf16.mxu0 %v163
  %365 = vmatmul.mubr.bf16.gmra.mrb[0].mxu0 %v162
  %v366 = vpop.f32.mrb[0].mxu0
  %v367 = vadd.f32 0.0, %v366
  %v368 = vpop.f32.mrb[0].mxu0
  %v369 = vpop.f32.mrb[0].mxu0
  %v370 = vadd.f32 0.0, %v369
  %v371 = vpop.f32.mrb[0].mxu0
  %372 = vdwg.mxu0
  %v373 = vadd.f32 %v36, %v311
  %v374 = vadd.f32 %v37, %v314
  %v375 = vadd.f32 %v38, %v319
  %v376 = vadd.f32 %v39, %v322
  %v377 = vadd.f32 %v40, %v327
  %v378 = vadd.f32 %v41, %v330
  %v379 = vadd.f32 %v42, %v335
  %v380 = vadd.f32 %v43, %v338
  %v381 = vadd.f32 %v44, %v343
  %v382 = vadd.f32 %v45, %v346
  %v383 = vadd.f32 %v46, %v351
  %v384 = vadd.f32 %v47, %v354
  %v385 = vadd.f32 %v48, %v359
  %v386 = vadd.f32 %v49, %v362
  %v387 = vadd.f32 %v50, %v367
  %v388 = vadd.f32 %v51, %v370
  %vm389 = vcmask 261120
  %390 = vst.msk [vmem:[#allocation2] sm:$0xff] %vm389, %v373
  %391 = vst.msk [vmem:[#allocation2 + $0x8] sm:$0xff] %vm389, %v374
  %392 = vst.msk [vmem:[#allocation2 + $0x10] sm:$0xff] %vm389, %v375
  %393 = vst.msk [vmem:[#allocation2 + $0x18] sm:$0xff] %vm389, %v376
  %394 = vst.msk [vmem:[#allocation2 + $0x20] sm:$0xff] %vm389, %v377
  %395 = vst.msk [vmem:[#allocation2 + $0x28] sm:$0xff] %vm389, %v378
  %396 = vst.msk [vmem:[#allocation2 + $0x30] sm:$0xff] %vm389, %v379
  %397 = vst.msk [vmem:[#allocation2 + $0x38] sm:$0xff] %vm389, %v380
  %398 = vst.msk [vmem:[#allocation2 + $0x40] sm:$0xff] %vm389, %v381
  %399 = vst.msk [vmem:[#allocation2 + $0x48] sm:$0xff] %vm389, %v382
  %400 = vst.msk [vmem:[#allocation2 + $0x50] sm:$0xff] %vm389, %v383
  %401 = vst.msk [vmem:[#allocation2 + $0x58] sm:$0xff] %vm389, %v384
  %402 = vst.msk [vmem:[#allocation2 + $0x60] sm:$0xff] %vm389, %v385
  %403 = vst.msk [vmem:[#allocation2 + $0x68] sm:$0xff] %vm389, %v386
  %404 = vst.msk [vmem:[#allocation2 + $0x70] sm:$0xff] %vm389, %v387
  %405 = vst.msk [vmem:[#allocation2 + $0x78] sm:$0xff] %vm389, %v388
  // Predicated region
  $region18: #{dqn_forward.4} parent=0 // pred_check
    %p406 = pneg %p15
  $region19: #{dqn_forward.4} parent=0 // pred_check_branch
    %408 = sbr.rel (%p406) target = $region21
  $region20: #{dqn_forward.4} parent=0 // pred_region
    %v409 = vld [vmem:[#allocation2] sm:$0xff]
    %v410 = vld [vmem:[#allocation2 + $0x8] sm:$0xff]
    %v411 = vld [vmem:[#allocation2 + $0x10] sm:$0xff]
    %v412 = vld [vmem:[#allocation2 + $0x18] sm:$0xff]
    %v413 = vld [vmem:[#allocation2 + $0x20] sm:$0xff]
    %v414 = vld [vmem:[#allocation2 + $0x28] sm:$0xff]
    %v415 = vld [vmem:[#allocation2 + $0x30] sm:$0xff]
    %v416 = vld [vmem:[#allocation2 + $0x38] sm:$0xff]
    %v417 = vld [vmem:[#allocation2 + $0x40] sm:$0xff]
    %v418 = vld [vmem:[#allocation2 + $0x48] sm:$0xff]
    %v419 = vld [vmem:[#allocation2 + $0x50] sm:$0xff]
    %v420 = vld [vmem:[#allocation2 + $0x58] sm:$0xff]
    %v421 = vld [vmem:[#allocation2 + $0x60] sm:$0xff]
    %v422 = vld [vmem:[#allocation2 + $0x68] sm:$0xff]
    %v423 = vld [vmem:[#allocation2 + $0x70] sm:$0xff]
    %v424 = vld [vmem:[#allocation2 + $0x78] sm:$0xff]
    %v425 = vld [vmem:[%s2] sm:$0x1]
    %v427 = vlaneseq
    %v428 = vshrl.u32 %v427, 7
    %v429 = vsub.s32 0, %v428
    %v430 = vrot.slane %v425, %v429
    %v432 = vadd.f32 %v409, %v430
    %v433 = vadd.f32 %v410, %v430
    %v434 = vadd.f32 %v411, %v430
    %v435 = vadd.f32 %v412, %v430
    %v436 = vadd.f32 %v413, %v430
    %v437 = vadd.f32 %v414, %v430
    %v438 = vadd.f32 %v415, %v430
    %v439 = vadd.f32 %v416, %v430
    %v440 = vadd.f32 %v417, %v430
    %v441 = vadd.f32 %v418, %v430
    %v442 = vadd.f32 %v419, %v430
    %v443 = vadd.f32 %v420, %v430
    %v444 = vadd.f32 %v421, %v430
    %v445 = vadd.f32 %v422, %v430
    %v446 = vadd.f32 %v423, %v430
    %v447 = vadd.f32 %v424, %v430
    %v448 = vmax.f32 %v432, 0.0
    %v449 = vmax.f32 %v433, 0.0
    %v450 = vmax.f32 %v434, 0.0
    %v451 = vmax.f32 %v435, 0.0
    %v452 = vmax.f32 %v436, 0.0
    %v453 = vmax.f32 %v437, 0.0
    %v454 = vmax.f32 %v438, 0.0
    %v455 = vmax.f32 %v439, 0.0
    %v456 = vmax.f32 %v440, 0.0
    %v457 = vmax.f32 %v441, 0.0
    %v458 = vmax.f32 %v442, 0.0
    %v459 = vmax.f32 %v443, 0.0
    %v460 = vmax.f32 %v444, 0.0
    %v461 = vmax.f32 %v445, 0.0
    %v462 = vmax.f32 %v446, 0.0
    %v463 = vmax.f32 %v447, 0.0
    %v464 = vpack.c.bf16 %v449, %v448
    %v465 = vpack.c.bf16 %v451, %v450
    %v466 = vpack.c.bf16 %v453, %v452
    %v467 = vpack.c.bf16 %v455, %v454
    %v468 = vpack.c.bf16 %v457, %v456
    %v469 = vpack.c.bf16 %v459, %v458
    %v470 = vpack.c.bf16 %v461, %v460
    %v471 = vpack.c.bf16 %v463, %v462
    %v480 = vunpack.c.l.b16 %v464
    %v481 = vunpack.c.h.b16 %v464
    %v482 = vunpack.c.l.b16 %v465
    %v483 = vunpack.c.h.b16 %v465
    %v484 = vunpack.c.l.b16 %v466
    %v485 = vunpack.c.h.b16 %v466
    %v486 = vunpack.c.l.b16 %v467
    %v487 = vunpack.c.h.b16 %v467
    %v488 = vunpack.c.l.b16 %v468
    %v489 = vunpack.c.h.b16 %v468
    %v490 = vunpack.c.l.b16 %v469
    %v491 = vunpack.c.h.b16 %v469
    %v492 = vunpack.c.l.b16 %v470
    %v493 = vunpack.c.h.b16 %v470
    %v494 = vunpack.c.l.b16 %v471
    %v495 = vunpack.c.h.b16 %v471
    %v496 = vpack.c.b16 %v480, %v480
    %v497 = vpack.c.b16 %v481, %v481
    %v498 = vpack.c.b16 %v482, %v482
    %v499 = vpack.c.b16 %v483, %v483
    %v500 = vpack.c.b16 %v484, %v484
    %v501 = vpack.c.b16 %v485, %v485
    %v502 = vpack.c.b16 %v486, %v486
    %v503 = vpack.c.b16 %v487, %v487
    %v504 = vpack.c.b16 %v488, %v488
    %v505 = vpack.c.b16 %v489, %v489
    %v506 = vpack.c.b16 %v490, %v490
    %v507 = vpack.c.b16 %v491, %v491
    %v508 = vpack.c.b16 %v492, %v492
    %v509 = vpack.c.b16 %v493, %v493
    %v510 = vpack.c.b16 %v494, %v494
    %v511 = vpack.c.b16 %v495, %v495
    %vm528 = vcmask 257024
    %529 = vst.msk [vmem:[%s3] sm:$0xf] %vm528, %v496
    %530 = vst.msk [vmem:[%s3 + $0x4] sm:$0xf] %vm528, %v497
    %531 = vst.msk [vmem:[%s3 + $0x8] sm:$0xf] %vm528, %v498
    %532 = vst.msk [vmem:[%s3 + $0xc] sm:$0xf] %vm528, %v499
    %533 = vst.msk [vmem:[%s3 + $0x10] sm:$0xf] %vm528, %v500
    %534 = vst.msk [vmem:[%s3 + $0x14] sm:$0xf] %vm528, %v501
    %535 = vst.msk [vmem:[%s3 + $0x18] sm:$0xf] %vm528, %v502
    %536 = vst.msk [vmem:[%s3 + $0x1c] sm:$0xf] %vm528, %v503
    %537 = vst.msk [vmem:[%s3 + $0x20] sm:$0xf] %vm528, %v504
    %538 = vst.msk [vmem:[%s3 + $0x24] sm:$0xf] %vm528, %v505
    %539 = vst.msk [vmem:[%s3 + $0x28] sm:$0xf] %vm528, %v506
    %540 = vst.msk [vmem:[%s3 + $0x2c] sm:$0xf] %vm528, %v507
    %541 = vst.msk [vmem:[%s3 + $0x30] sm:$0xf] %vm528, %v508
    %542 = vst.msk [vmem:[%s3 + $0x34] sm:$0xf] %vm528, %v509
    %543 = vst.msk [vmem:[%s3 + $0x38] sm:$0xf] %vm528, %v510
    %544 = vst.msk [vmem:[%s3 + $0x3c] sm:$0xf] %vm528, %v511
  $region21: #{dqn_forward.4} parent=0 // pred_fallthru
    _
  // Predicated region
  $region22: #{dqn_forward.4} parent=0 // pred_check
    _
  $region23: #{dqn_forward.4} parent=0 // pred_check_branch
    %546 = sbr.rel (0) target = $region25
  $region24: #{dqn_forward.4} parent=0 // pred_region
    _
  $region25: #{dqn_forward.4} parent=0 // pred_fallthru
    _
  // Predicated region
  $region26: #{dqn_forward.4} parent=0 // pred_check
    _
  $region27: #{dqn_forward.4} parent=0 // pred_check_branch
    %548 = sbr.rel (0) target = $region29
  $region28: #{dqn_forward.4} parent=0 // pred_region
    _
  $region29: #{dqn_forward.4} parent=0 // pred_fallthru
    _

// kernel: dqn_forward.5
$region0: #{dqn_forward.5}
  #allocation0 [shape = 'u32[]', space=smem, size = 0x4, offset = 0x4, fixed_abs, tag = 'smem constant byte address 0x4 - core index']
  #allocation1 [shape = 'u32[144,128]{1,0:T(1,128)}', space=vmem, size = 0x12000, scoped, tag = 'internal scratch']
  #allocation2 [shape = 'f32[32,64]{1,0:T(8,128)}', space=vmem, size = 0x4000, scoped, tag = 'scratch operand']
  %s0 = inlined_call_operand.vmem [shape: bf16[32,512], index: 0, kind: input, shape index: {}]
  %s1 = inlined_call_operand.vmem [shape: bf16[512,64], index: 1, kind: input, shape index: {}]
  %s2 = inlined_call_operand.vmem [shape: f32[1,64], index: 2, kind: input, shape index: {}]
  %s3 = inlined_call_operand.vmem [shape: bf16[32,64], index: 3, kind: output, shape index: {}]
  %s4 = sld [smem:[#allocation0]]
  $region30: #{dqn_forward.5} parent=0
    _
  %s6 = ssub.s32 1, %s4
  %s7 = scalar_select 0, %s6, %s4
  // Predicated region
  $region2: #{dqn_forward.5} parent=0 // pred_check
    _
  $region3: #{dqn_forward.5} parent=0 // pred_check_branch
    %9 = sbr.rel (0) target = $region5
  $region4: #{dqn_forward.5} parent=0 // pred_region
    _
  $region5: #{dqn_forward.5} parent=0 // pred_fallthru
    _
  // Predicated region
  $region6: #{dqn_forward.5} parent=0 // pred_check
    _
  $region7: #{dqn_forward.5} parent=0 // pred_check_branch
    %11 = sbr.rel (0) target = $region9
  $region8: #{dqn_forward.5} parent=0 // pred_region
    _
  $region9: #{dqn_forward.5} parent=0 // pred_fallthru
    _
  // Predicated region
  $region10: #{dqn_forward.5} parent=0 // pred_check
    _
  $region11: #{dqn_forward.5} parent=0 // pred_check_branch
    %13 = sbr.rel (0) target = $region13
  $region12: #{dqn_forward.5} parent=0 // pred_region
    _
  $region13: #{dqn_forward.5} parent=0 // pred_fallthru
    _
  %p15 = scmp.eq.s32.totalorder 0, 0
  // Predicated region
  $region14: #{dqn_forward.5} parent=0 // pred_check
    %p16 = pneg %p15
  $region15: #{dqn_forward.5} parent=0 // pred_check_branch
    %18 = sbr.rel (%p16) target = $region17
  $region16: #{dqn_forward.5} parent=0 // pred_region
    %vm19 = vcmask 523264
    %20 = vst.msk [vmem:[#allocation2] sm:$0xff] %vm19, 0.0
    %21 = vst.msk [vmem:[#allocation2 + $0x8] sm:$0xff] %vm19, 0.0
    %22 = vst.msk [vmem:[#allocation2 + $0x10] sm:$0xff] %vm19, 0.0
    %23 = vst.msk [vmem:[#allocation2 + $0x18] sm:$0xff] %vm19, 0.0
  $region17: #{dqn_forward.5} parent=0 // pred_fallthru
    _
  %v24 = vld [vmem:[#allocation2] sm:$0xff]
  %v25 = vld [vmem:[#allocation2 + $0x8] sm:$0xff]
  %v26 = vld [vmem:[#allocation2 + $0x10] sm:$0xff]
  %v27 = vld [vmem:[#allocation2 + $0x18] sm:$0xff]
  %v28 = vld [vmem:[%s0] sm:$0xff]
  %v29 = vld [vmem:[%s0 + $0x8] sm:$0xff]
  %v30 = vld [vmem:[%s0 + $0x10] sm:$0xff]
  %v31 = vld [vmem:[%s0 + $0x18] sm:$0xff]
  %v32 = vld [vmem:[%s0 + $0x20] sm:$0xff]
  %v33 = vld [vmem:[%s0 + $0x28] sm:$0xff]
  %v34 = vld [vmem:[%s0 + $0x30] sm:$0xff]
  %v35 = vld [vmem:[%s0 + $0x38] sm:$0xff]
  %v36 = vld [vmem:[%s1] sm:$0xf]
  %v37 = vld [vmem:[%s1 + $0x4] sm:$0xf]
  %v38 = vld [vmem:[%s1 + $0x8] sm:$0xf]
  %v39 = vld [vmem:[%s1 + $0xc] sm:$0xf]
  %v40 = vld [vmem:[%s1 + $0x10] sm:$0xf]
  %v41 = vld [vmem:[%s1 + $0x14] sm:$0xf]
  %v42 = vld [vmem:[%s1 + $0x18] sm:$0xf]
  %v43 = vld [vmem:[%s1 + $0x1c] sm:$0xf]
  %v44 = vld [vmem:[%s1 + $0x20] sm:$0xf]
  %v45 = vld [vmem:[%s1 + $0x24] sm:$0xf]
  %v46 = vld [vmem:[%s1 + $0x28] sm:$0xf]
  %v47 = vld [vmem:[%s1 + $0x2c] sm:$0xf]
  %v48 = vld [vmem:[%s1 + $0x30] sm:$0xf]
  %v49 = vld [vmem:[%s1 + $0x34] sm:$0xf]
  %v50 = vld [vmem:[%s1 + $0x38] sm:$0xf]
  %v51 = vld [vmem:[%s1 + $0x3c] sm:$0xf]
  %v52 = vld [vmem:[%s1 + $0x40] sm:$0xf]
  %v53 = vld [vmem:[%s1 + $0x44] sm:$0xf]
  %v54 = vld [vmem:[%s1 + $0x48] sm:$0xf]
  %v55 = vld [vmem:[%s1 + $0x4c] sm:$0xf]
  %v56 = vld [vmem:[%s1 + $0x50] sm:$0xf]
  %v57 = vld [vmem:[%s1 + $0x54] sm:$0xf]
  %v58 = vld [vmem:[%s1 + $0x58] sm:$0xf]
  %v59 = vld [vmem:[%s1 + $0x5c] sm:$0xf]
  %v60 = vld [vmem:[%s1 + $0x60] sm:$0xf]
  %v61 = vld [vmem:[%s1 + $0x64] sm:$0xf]
  %v62 = vld [vmem:[%s1 + $0x68] sm:$0xf]
  %v63 = vld [vmem:[%s1 + $0x6c] sm:$0xf]
  %v64 = vld [vmem:[%s1 + $0x70] sm:$0xf]
  %v65 = vld [vmem:[%s1 + $0x74] sm:$0xf]
  %v66 = vld [vmem:[%s1 + $0x78] sm:$0xf]
  %v67 = vld [vmem:[%s1 + $0x7c] sm:$0xf]
  %v68 = vld [vmem:[%s1 + $0x80] sm:$0xf]
  %v69 = vld [vmem:[%s1 + $0x84] sm:$0xf]
  %v70 = vld [vmem:[%s1 + $0x88] sm:$0xf]
  %v71 = vld [vmem:[%s1 + $0x8c] sm:$0xf]
  %v72 = vld [vmem:[%s1 + $0x90] sm:$0xf]
  %v73 = vld [vmem:[%s1 + $0x94] sm:$0xf]
  %v74 = vld [vmem:[%s1 + $0x98] sm:$0xf]
  %v75 = vld [vmem:[%s1 + $0x9c] sm:$0xf]
  %v76 = vld [vmem:[%s1 + $0xa0] sm:$0xf]
  %v77 = vld [vmem:[%s1 + $0xa4] sm:$0xf]
  %v78 = vld [vmem:[%s1 + $0xa8] sm:$0xf]
  %v79 = vld [vmem:[%s1 + $0xac] sm:$0xf]
  %v80 = vld [vmem:[%s1 + $0xb0] sm:$0xf]
  %v81 = vld [vmem:[%s1 + $0xb4] sm:$0xf]
  %v82 = vld [vmem:[%s1 + $0xb8] sm:$0xf]
  %v83 = vld [vmem:[%s1 + $0xbc] sm:$0xf]
  %v84 = vld [vmem:[%s1 + $0xc0] sm:$0xf]
  %v85 = vld [vmem:[%s1 + $0xc4] sm:$0xf]
  %v86 = vld [vmem:[%s1 + $0xc8] sm:$0xf]
  %v87 = vld [vmem:[%s1 + $0xcc] sm:$0xf]
  %v88 = vld [vmem:[%s1 + $0xd0] sm:$0xf]
  %v89 = vld [vmem:[%s1 + $0xd4] sm:$0xf]
  %v90 = vld [vmem:[%s1 + $0xd8] sm:$0xf]
  %v91 = vld [vmem:[%s1 + $0xdc] sm:$0xf]
  %v92 = vld [vmem:[%s1 + $0xe0] sm:$0xf]
  %v93 = vld [vmem:[%s1 + $0xe4] sm:$0xf]
  %v94 = vld [vmem:[%s1 + $0xe8] sm:$0xf]
  %v95 = vld [vmem:[%s1 + $0xec] sm:$0xf]
  %v96 = vld [vmem:[%s1 + $0xf0] sm:$0xf]
  %v97 = vld [vmem:[%s1 + $0xf4] sm:$0xf]
  %v98 = vld [vmem:[%s1 + $0xf8] sm:$0xf]
  %v99 = vld [vmem:[%s1 + $0xfc] sm:$0xf]
  %v108 = vunpack.c.l.b16 %v28
  %v109 = vunpack.c.h.b16 %v28
  %v110 = vunpack.c.l.b16 %v29
  %v111 = vunpack.c.h.b16 %v29
  %v112 = vunpack.c.l.b16 %v30
  %v113 = vunpack.c.h.b16 %v30
  %v114 = vunpack.c.l.b16 %v31
  %v115 = vunpack.c.h.b16 %v31
  %v116 = vunpack.c.l.b16 %v32
  %v117 = vunpack.c.h.b16 %v32
  %v118 = vunpack.c.l.b16 %v33
  %v119 = vunpack.c.h.b16 %v33
  %v120 = vunpack.c.l.b16 %v34
  %v121 = vunpack.c.h.b16 %v34
  %v122 = vunpack.c.l.b16 %v35
  %v123 = vunpack.c.h.b16 %v35
  %v124 = vpack.c.b16 %v112, %v108
  %v125 = vpack.c.b16 %v113, %v109
  %v126 = vpack.c.b16 %v114, %v110
  %v127 = vpack.c.b16 %v115, %v111
  %v128 = vpack.c.b16 %v120, %v116
  %v129 = vpack.c.b16 %v121, %v117
  %v130 = vpack.c.b16 %v122, %v118
  %v131 = vpack.c.b16 %v123, %v119
  %v204 = vunpack.c.l.b16 %v36
  %v205 = vunpack.c.l.b16 %v37
  %v206 = vunpack.c.l.b16 %v38
  %v207 = vunpack.c.l.b16 %v39
  %v208 = vunpack.c.l.b16 %v40
  %v209 = vunpack.c.l.b16 %v41
  %v210 = vunpack.c.l.b16 %v42
  %v211 = vunpack.c.l.b16 %v43
  %v212 = vunpack.c.l.b16 %v44
  %v213 = vunpack.c.l.b16 %v45
  %v214 = vunpack.c.l.b16 %v46
  %v215 = vunpack.c.l.b16 %v47
  %v216 = vunpack.c.l.b16 %v48
  %v217 = vunpack.c.l.b16 %v49
  %v218 = vunpack.c.l.b16 %v50
  %v219 = vunpack.c.l.b16 %v51
  %v220 = vunpack.c.l.b16 %v52
  %v221 = vunpack.c.l.b16 %v53
  %v222 = vunpack.c.l.b16 %v54
  %v223 = vunpack.c.l.b16 %v55
  %v224 = vunpack.c.l.b16 %v56
  %v225 = vunpack.c.l.b16 %v57
  %v226 = vunpack.c.l.b16 %v58
  %v227 = vunpack.c.l.b16 %v59
  %v228 = vunpack.c.l.b16 %v60
  %v229 = vunpack.c.l.b16 %v61
  %v230 = vunpack.c.l.b16 %v62
  %v231 = vunpack.c.l.b16 %v63
  %v232 = vunpack.c.l.b16 %v64
  %v233 = vunpack.c.l.b16 %v65
  %v234 = vunpack.c.l.b16 %v66
  %v235 = vunpack.c.l.b16 %v67
  %v236 = vunpack.c.l.b16 %v68
  %v237 = vunpack.c.l.b16 %v69
  %v238 = vunpack.c.l.b16 %v70
  %v239 = vunpack.c.l.b16 %v71
  %v240 = vunpack.c.l.b16 %v72
  %v241 = vunpack.c.l.b16 %v73
  %v242 = vunpack.c.l.b16 %v74
  %v243 = vunpack.c.l.b16 %v75
  %v244 = vunpack.c.l.b16 %v76
  %v245 = vunpack.c.l.b16 %v77
  %v246 = vunpack.c.l.b16 %v78
  %v247 = vunpack.c.l.b16 %v79
  %v248 = vunpack.c.l.b16 %v80
  %v249 = vunpack.c.l.b16 %v81
  %v250 = vunpack.c.l.b16 %v82
  %v251 = vunpack.c.l.b16 %v83
  %v252 = vunpack.c.l.b16 %v84
  %v253 = vunpack.c.l.b16 %v85
  %v254 = vunpack.c.l.b16 %v86
  %v255 = vunpack.c.l.b16 %v87
  %v256 = vunpack.c.l.b16 %v88
  %v257 = vunpack.c.l.b16 %v89
  %v258 = vunpack.c.l.b16 %v90
  %v259 = vunpack.c.l.b16 %v91
  %v260 = vunpack.c.l.b16 %v92
  %v261 = vunpack.c.l.b16 %v93
  %v262 = vunpack.c.l.b16 %v94
  %v263 = vunpack.c.l.b16 %v95
  %v264 = vunpack.c.l.b16 %v96
  %v265 = vunpack.c.l.b16 %v97
  %v266 = vunpack.c.l.b16 %v98
  %v267 = vunpack.c.l.b16 %v99
  %v268 = vpack.c.b16 %v205, %v204
  %v269 = vpack.c.b16 %v207, %v206
  %v270 = vpack.c.b16 %v209, %v208
  %v271 = vpack.c.b16 %v211, %v210
  %v272 = vpack.c.b16 %v213, %v212
  %v273 = vpack.c.b16 %v215, %v214
  %v274 = vpack.c.b16 %v217, %v216
  %v275 = vpack.c.b16 %v219, %v218
  %v276 = vpack.c.b16 %v221, %v220
  %v277 = vpack.c.b16 %v223, %v222
  %v278 = vpack.c.b16 %v225, %v224
  %v279 = vpack.c.b16 %v227, %v226
  %v280 = vpack.c.b16 %v229, %v228
  %v281 = vpack.c.b16 %v231, %v230
  %v282 = vpack.c.b16 %v233, %v232
  %v283 = vpack.c.b16 %v235, %v234
  %v284 = vpack.c.b16 %v237, %v236
  %v285 = vpack.c.b16 %v239, %v238
  %v286 = vpack.c.b16 %v241, %v240
  %v287 = vpack.c.b16 %v243, %v242
  %v288 = vpack.c.b16 %v245, %v244
  %v289 = vpack.c.b16 %v247, %v246
  %v290 = vpack.c.b16 %v249, %v248
  %v291 = vpack.c.b16 %v251, %v250
  %v292 = vpack.c.b16 %v253, %v252
  %v293 = vpack.c.b16 %v255, %v254
  %v294 = vpack.c.b16 %v257, %v256
  %v295 = vpack.c.b16 %v259, %v258
  %v296 = vpack.c.b16 %v261, %v260
  %v297 = vpack.c.b16 %v263, %v262
  %v298 = vpack.c.b16 %v265, %v264
  %v299 = vpack.c.b16 %v267, %v266
  %332 = vmatprep.subr.bf16.mxu0 0
  %333 = vmatpush1.bf16.msra.mxu0 %v268
  %334 = vmatprep.subr.bf16.mxu0 0
  %335 = vmatpush1.bf16.msra.mxu0 %v269
  %336 = vmatprep.subr.bf16.mxu0 0
  %337 = vmatpush1.bf16.msra.mxu0 %v270
  %338 = vmatprep.subr.bf16.mxu0 0
  %339 = vmatpush1.bf16.msra.mxu0 %v271
  %340 = vmatprep.subr.bf16.mxu0 0
  %341 = vmatpush1.bf16.msra.mxu0 %v272
  %342 = vmatprep.subr.bf16.mxu0 0
  %343 = vmatpush1.bf16.msra.mxu0 %v273
  %344 = vmatprep.subr.bf16.mxu0 0
  %345 = vmatpush1.bf16.msra.mxu0 %v274
  %346 = vmatprep.subr.bf16.mxu0 0
  %347 = vmatpush1.bf16.msra.mxu0 %v275
  %348 = vmatprep.subr.bf16.mxu0 0
  %349 = vmatpush1.bf16.msra.mxu0 %v276
  %350 = vmatprep.subr.bf16.mxu0 0
  %351 = vmatpush1.bf16.msra.mxu0 %v277
  %352 = vmatprep.subr.bf16.mxu0 0
  %353 = vmatpush1.bf16.msra.mxu0 %v278
  %354 = vmatprep.subr.bf16.mxu0 0
  %355 = vmatpush1.bf16.msra.mxu0 %v279
  %356 = vmatprep.subr.bf16.mxu0 0
  %357 = vmatpush1.bf16.msra.mxu0 %v280
  %358 = vmatprep.subr.bf16.mxu0 0
  %359 = vmatpush1.bf16.msra.mxu0 %v281
  %360 = vmatprep.subr.bf16.mxu0 0
  %361 = vmatpush1.bf16.msra.mxu0 %v282
  %362 = vmatprep.subr.bf16.mxu0 0
  %363 = vmatpush1.bf16.msra.mxu0 %v283
  %364 = vmatprep.mubr.bf16.mxu0 %v125
  %365 = vmatmul.mubr.bf16.gmra.mrb[0].mxu0 %v124
  %v366 = vpop.f32.mrb[0].mxu0
  %v367 = vadd.f32 0.0, %v366
  %v368 = vpop.f32.mrb[0].mxu0
  %v369 = vpop.f32.mrb[0].mxu0
  %v370 = vadd.f32 0.0, %v369
  %v371 = vpop.f32.mrb[0].mxu0
  %372 = vmatprep.mubr.bf16.mxu0 %v129
  %373 = vmatmul.mubr.bf16.gmra.mrb[0].mxu0 %v128
  %v374 = vpop.f32.mrb[0].mxu0
  %v375 = vadd.f32 0.0, %v374
  %v376 = vpop.f32.mrb[0].mxu0
  %v377 = vpop.f32.mrb[0].mxu0
  %v378 = vadd.f32 0.0, %v377
  %v379 = vpop.f32.mrb[0].mxu0
  %380 = vdwg.mxu0
  %381 = vmatprep.subr.bf16.mxu0 0
  %382 = vmatpush1.bf16.msra.mxu0 %v284
  %383 = vmatprep.subr.bf16.mxu0 0
  %384 = vmatpush1.bf16.msra.mxu0 %v285
  %385 = vmatprep.subr.bf16.mxu0 0
  %386 = vmatpush1.bf16.msra.mxu0 %v286
  %387 = vmatprep.subr.bf16.mxu0 0
  %388 = vmatpush1.bf16.msra.mxu0 %v287
  %389 = vmatprep.subr.bf16.mxu0 0
  %390 = vmatpush1.bf16.msra.mxu0 %v288
  %391 = vmatprep.subr.bf16.mxu0 0
  %392 = vmatpush1.bf16.msra.mxu0 %v289
  %393 = vmatprep.subr.bf16.mxu0 0
  %394 = vmatpush1.bf16.msra.mxu0 %v290
  %395 = vmatprep.subr.bf16.mxu0 0
  %396 = vmatpush1.bf16.msra.mxu0 %v291
  %397 = vmatprep.subr.bf16.mxu0 0
  %398 = vmatpush1.bf16.msra.mxu0 %v292
  %399 = vmatprep.subr.bf16.mxu0 0
  %400 = vmatpush1.bf16.msra.mxu0 %v293
  %401 = vmatprep.subr.bf16.mxu0 0
  %402 = vmatpush1.bf16.msra.mxu0 %v294
  %403 = vmatprep.subr.bf16.mxu0 0
  %404 = vmatpush1.bf16.msra.mxu0 %v295
  %405 = vmatprep.subr.bf16.mxu0 0
  %406 = vmatpush1.bf16.msra.mxu0 %v296
  %407 = vmatprep.subr.bf16.mxu0 0
  %408 = vmatpush1.bf16.msra.mxu0 %v297
  %409 = vmatprep.subr.bf16.mxu0 0
  %410 = vmatpush1.bf16.msra.mxu0 %v298
  %411 = vmatprep.subr.bf16.mxu0 0
  %412 = vmatpush1.bf16.msra.mxu0 %v299
  %413 = vmatprep.mubr.bf16.mxu0 %v127
  %414 = vmatmul.mubr.bf16.gmra.mrb[0].mxu0 %v126
  %v415 = vpop.f32.mrb[0].mxu0
  %v416 = vadd.f32 %v367, %v415
  %v417 = vpop.f32.mrb[0].mxu0
  %v418 = vpop.f32.mrb[0].mxu0
  %v419 = vadd.f32 %v370, %v418
  %v420 = vpop.f32.mrb[0].mxu0
  %421 = vmatprep.mubr.bf16.mxu0 %v131
  %422 = vmatmul.mubr.bf16.gmra.mrb[0].mxu0 %v130
  %v423 = vpop.f32.mrb[0].mxu0
  %v424 = vadd.f32 %v375, %v423
  %v425 = vpop.f32.mrb[0].mxu0
  %v426 = vpop.f32.mrb[0].mxu0
  %v427 = vadd.f32 %v378, %v426
  %v428 = vpop.f32.mrb[0].mxu0
  %429 = vdwg.mxu0
  %v430 = vadd.f32 %v24, %v416
  %v431 = vadd.f32 %v25, %v419
  %v432 = vadd.f32 %v26, %v424
  %v433 = vadd.f32 %v27, %v427
  %vm434 = vcmask 523264
  %435 = vst.msk [vmem:[#allocation2] sm:$0xff] %vm434, %v430
  %436 = vst.msk [vmem:[#allocation2 + $0x8] sm:$0xff] %vm434, %v431
  %437 = vst.msk [vmem:[#allocation2 + $0x10] sm:$0xff] %vm434, %v432
  %438 = vst.msk [vmem:[#allocation2 + $0x18] sm:$0xff] %vm434, %v433
  // Predicated region
  $region18: #{dqn_forward.5} parent=0 // pred_check
    %p439 = pneg %p15
  $region19: #{dqn_forward.5} parent=0 // pred_check_branch
    %441 = sbr.rel (%p439) target = $region21
  $region20: #{dqn_forward.5} parent=0 // pred_region
    %v442 = vld [vmem:[#allocation2] sm:$0xff]
    %v443 = vld [vmem:[#allocation2 + $0x8] sm:$0xff]
    %v444 = vld [vmem:[#allocation2 + $0x10] sm:$0xff]
    %v445 = vld [vmem:[#allocation2 + $0x18] sm:$0xff]
    %v446 = vld [vmem:[%s2] sm:$0x1]
    %v448 = vlaneseq
    %v449 = vshrl.u32 %v448, 7
    %v450 = vsub.s32 0, %v449
    %v451 = vrot.slane %v446, %v450
    %v453 = vadd.f32 %v442, %v451
    %v454 = vadd.f32 %v443, %v451
    %v455 = vadd.f32 %v444, %v451
    %v456 = vadd.f32 %v445, %v451
    %v457 = vmax.f32 %v453, 0.0
    %v458 = vmax.f32 %v454, 0.0
    %v459 = vmax.f32 %v455, 0.0
    %v460 = vmax.f32 %v456, 0.0
    %v461 = vpack.c.bf16 %v458, %v457
    %v462 = vpack.c.bf16 %v460, %v459
    %v465 = vunpack.c.l.b16 %v461
    %v466 = vunpack.c.h.b16 %v461
    %v467 = vunpack.c.l.b16 %v462
    %v468 = vunpack.c.h.b16 %v462
    %v469 = vpack.c.b16 %v465, %v465
    %v470 = vpack.c.b16 %v466, %v466
    %v471 = vpack.c.b16 %v467, %v467
    %v472 = vpack.c.b16 %v468, %v468
    %vm477 = vcmask 519168
    %478 = vst.msk [vmem:[%s3] sm:$0xf] %vm477, %v469
    %479 = vst.msk [vmem:[%s3 + $0x4] sm:$0xf] %vm477, %v470
    %480 = vst.msk [vmem:[%s3 + $0x8] sm:$0xf] %vm477, %v471
    %481 = vst.msk [vmem:[%s3 + $0xc] sm:$0xf] %vm477, %v472
  $region21: #{dqn_forward.5} parent=0 // pred_fallthru
    _
  // Predicated region
  $region22: #{dqn_forward.5} parent=0 // pred_check
    _
  $region23: #{dqn_forward.5} parent=0 // pred_check_branch
    %483 = sbr.rel (0) target = $region25
  $region24: #{dqn_forward.5} parent=0 // pred_region
    _
  $region25: #{dqn_forward.5} parent=0 // pred_fallthru
    _
  // Predicated region
  $region26: #{dqn_forward.5} parent=0 // pred_check
    _
  $region27: #{dqn_forward.5} parent=0 // pred_check_branch
    %485 = sbr.rel (0) target = $region29
  $region28: #{dqn_forward.5} parent=0 // pred_region
    _
  $region29: #{dqn_forward.5} parent=0 // pred_fallthru
    _

// kernel: dqn_forward.6
$region0: #{dqn_forward.6}
  #allocation0 [shape = 'u32[]', space=smem, size = 0x4, offset = 0x4, fixed_abs, tag = 'smem constant byte address 0x4 - core index']
  #allocation1 [shape = 'u32[144,128]{1,0:T(1,128)}', space=vmem, size = 0x12000, scoped, tag = 'internal scratch']
  #allocation2 [shape = 'f32[16,64]{1,0:T(8,128)}', space=vmem, size = 0x2000, scoped, tag = 'scratch operand']
  %s0 = inlined_call_operand.vmem [shape: bf16[16,576], index: 0, kind: input, shape index: {}]
  %s1 = inlined_call_operand.vmem [shape: bf16[576,64], index: 1, kind: input, shape index: {}]
  %s2 = inlined_call_operand.vmem [shape: f32[1,64], index: 2, kind: input, shape index: {}]
  %s3 = inlined_call_operand.vmem [shape: bf16[16,64], index: 3, kind: output, shape index: {}]
  %s4 = sld [smem:[#allocation0]]
  $region30: #{dqn_forward.6} parent=0
    _
  %s6 = ssub.s32 1, %s4
  %s7 = scalar_select 0, %s6, %s4
  // Predicated region
  $region2: #{dqn_forward.6} parent=0 // pred_check
    _
  $region3: #{dqn_forward.6} parent=0 // pred_check_branch
    %9 = sbr.rel (0) target = $region5
  $region4: #{dqn_forward.6} parent=0 // pred_region
    _
  $region5: #{dqn_forward.6} parent=0 // pred_fallthru
    _
  // Predicated region
  $region6: #{dqn_forward.6} parent=0 // pred_check
    _
  $region7: #{dqn_forward.6} parent=0 // pred_check_branch
    %11 = sbr.rel (0) target = $region9
  $region8: #{dqn_forward.6} parent=0 // pred_region
    _
  $region9: #{dqn_forward.6} parent=0 // pred_fallthru
    _
  // Predicated region
  $region10: #{dqn_forward.6} parent=0 // pred_check
    _
  $region11: #{dqn_forward.6} parent=0 // pred_check_branch
    %13 = sbr.rel (0) target = $region13
  $region12: #{dqn_forward.6} parent=0 // pred_region
    _
  $region13: #{dqn_forward.6} parent=0 // pred_fallthru
    _
  %p15 = scmp.eq.s32.totalorder 0, 0
  // Predicated region
  $region14: #{dqn_forward.6} parent=0 // pred_check
    %p16 = pneg %p15
  $region15: #{dqn_forward.6} parent=0 // pred_check_branch
    %18 = sbr.rel (%p16) target = $region17
  $region16: #{dqn_forward.6} parent=0 // pred_region
    %vm19 = vcmask 523264
    %20 = vst.msk [vmem:[#allocation2] sm:$0xff] %vm19, 0.0
    %21 = vst.msk [vmem:[#allocation2 + $0x8] sm:$0xff] %vm19, 0.0
  $region17: #{dqn_forward.6} parent=0 // pred_fallthru
    _
  %v22 = vld [vmem:[#allocation2] sm:$0xff]
  %v23 = vld [vmem:[#allocation2 + $0x8] sm:$0xff]
  %v24 = vld [vmem:[%s0] sm:$0xff]
  %v25 = vld [vmem:[%s0 + $0x8] sm:$0xff]
  %v26 = vld [vmem:[%s0 + $0x10] sm:$0xf]
  %v27 = vld [vmem:[%s0 + $0x14] sm:$0xff]
  %v28 = vld [vmem:[%s0 + $0x1c] sm:$0xff]
  %v29 = vld [vmem:[%s0 + $0x24] sm:$0xf]
  %v30 = vld [vmem:[%s1] sm:$0xf]
  %v31 = vld [vmem:[%s1 + $0x4] sm:$0xf]
  %v32 = vld [vmem:[%s1 + $0x8] sm:$0xf]
  %v33 = vld [vmem:[%s1 + $0xc] sm:$0xf]
  %v34 = vld [vmem:[%s1 + $0x10] sm:$0xf]
  %v35 = vld [vmem:[%s1 + $0x14] sm:$0xf]
  %v36 = vld [vmem:[%s1 + $0x18] sm:$0xf]
  %v37 = vld [vmem:[%s1 + $0x1c] sm:$0xf]
  %v38 = vld [vmem:[%s1 + $0x20] sm:$0xf]
  %v39 = vld [vmem:[%s1 + $0x24] sm:$0xf]
  %v40 = vld [vmem:[%s1 + $0x28] sm:$0xf]
  %v41 = vld [vmem:[%s1 + $0x2c] sm:$0xf]
  %v42 = vld [vmem:[%s1 + $0x30] sm:$0xf]
  %v43 = vld [vmem:[%s1 + $0x34] sm:$0xf]
  %v44 = vld [vmem:[%s1 + $0x38] sm:$0xf]
  %v45 = vld [vmem:[%s1 + $0x3c] sm:$0xf]
  %v46 = vld [vmem:[%s1 + $0x40] sm:$0xf]
  %v47 = vld [vmem:[%s1 + $0x44] sm:$0xf]
  %v48 = vld [vmem:[%s1 + $0x48] sm:$0xf]
  %v49 = vld [vmem:[%s1 + $0x4c] sm:$0xf]
  %v50 = vld [vmem:[%s1 + $0x50] sm:$0xf]
  %v51 = vld [vmem:[%s1 + $0x54] sm:$0xf]
  %v52 = vld [vmem:[%s1 + $0x58] sm:$0xf]
  %v53 = vld [vmem:[%s1 + $0x5c] sm:$0xf]
  %v54 = vld [vmem:[%s1 + $0x60] sm:$0xf]
  %v55 = vld [vmem:[%s1 + $0x64] sm:$0xf]
  %v56 = vld [vmem:[%s1 + $0x68] sm:$0xf]
  %v57 = vld [vmem:[%s1 + $0x6c] sm:$0xf]
  %v58 = vld [vmem:[%s1 + $0x70] sm:$0xf]
  %v59 = vld [vmem:[%s1 + $0x74] sm:$0xf]
  %v60 = vld [vmem:[%s1 + $0x78] sm:$0xf]
  %v61 = vld [vmem:[%s1 + $0x7c] sm:$0xf]
  %v62 = vld [vmem:[%s1 + $0x80] sm:$0xf]
  %v63 = vld [vmem:[%s1 + $0x84] sm:$0xf]
  %v64 = vld [vmem:[%s1 + $0x88] sm:$0xf]
  %v65 = vld [vmem:[%s1 + $0x8c] sm:$0xf]
  %v66 = vld [vmem:[%s1 + $0x90] sm:$0xf]
  %v67 = vld [vmem:[%s1 + $0x94] sm:$0xf]
  %v68 = vld [vmem:[%s1 + $0x98] sm:$0xf]
  %v69 = vld [vmem:[%s1 + $0x9c] sm:$0xf]
  %v70 = vld [vmem:[%s1 + $0xa0] sm:$0xf]
  %v71 = vld [vmem:[%s1 + $0xa4] sm:$0xf]
  %v72 = vld [vmem:[%s1 + $0xa8] sm:$0xf]
  %v73 = vld [vmem:[%s1 + $0xac] sm:$0xf]
  %v74 = vld [vmem:[%s1 + $0xb0] sm:$0xf]
  %v75 = vld [vmem:[%s1 + $0xb4] sm:$0xf]
  %v76 = vld [vmem:[%s1 + $0xb8] sm:$0xf]
  %v77 = vld [vmem:[%s1 + $0xbc] sm:$0xf]
  %v78 = vld [vmem:[%s1 + $0xc0] sm:$0xf]
  %v79 = vld [vmem:[%s1 + $0xc4] sm:$0xf]
  %v80 = vld [vmem:[%s1 + $0xc8] sm:$0xf]
  %v81 = vld [vmem:[%s1 + $0xcc] sm:$0xf]
  %v82 = vld [vmem:[%s1 + $0xd0] sm:$0xf]
  %v83 = vld [vmem:[%s1 + $0xd4] sm:$0xf]
  %v84 = vld [vmem:[%s1 + $0xd8] sm:$0xf]
  %v85 = vld [vmem:[%s1 + $0xdc] sm:$0xf]
  %v86 = vld [vmem:[%s1 + $0xe0] sm:$0xf]
  %v87 = vld [vmem:[%s1 + $0xe4] sm:$0xf]
  %v88 = vld [vmem:[%s1 + $0xe8] sm:$0xf]
  %v89 = vld [vmem:[%s1 + $0xec] sm:$0xf]
  %v90 = vld [vmem:[%s1 + $0xf0] sm:$0xf]
  %v91 = vld [vmem:[%s1 + $0xf4] sm:$0xf]
  %v92 = vld [vmem:[%s1 + $0xf8] sm:$0xf]
  %v93 = vld [vmem:[%s1 + $0xfc] sm:$0xf]
  %v94 = vld [vmem:[%s1 + $0x100] sm:$0xf]
  %v95 = vld [vmem:[%s1 + $0x104] sm:$0xf]
  %v96 = vld [vmem:[%s1 + $0x108] sm:$0xf]
  %v97 = vld [vmem:[%s1 + $0x10c] sm:$0xf]
  %v98 = vld [vmem:[%s1 + $0x110] sm:$0xf]
  %v99 = vld [vmem:[%s1 + $0x114] sm:$0xf]
  %v100 = vld [vmem:[%s1 + $0x118] sm:$0xf]
  %v101 = vld [vmem:[%s1 + $0x11c] sm:$0xf]
  %v108 = vunpack.c.l.b16 %v24
  %v109 = vunpack.c.h.b16 %v24
  %v110 = vunpack.c.l.b16 %v25
  %v111 = vunpack.c.h.b16 %v25
  %v112 = vunpack.c.l.b16 %v26
  %v113 = vunpack.c.l.b16 %v27
  %v114 = vunpack.c.h.b16 %v27
  %v115 = vunpack.c.l.b16 %v28
  %v116 = vunpack.c.h.b16 %v28
  %v117 = vunpack.c.l.b16 %v29
  %v118 = vpack.c.b16 %v113, %v108
  %v119 = vpack.c.b16 %v114, %v109
  %v120 = vpack.c.b16 %v115, %v110
  %v121 = vpack.c.b16 %v116, %v111
  %v122 = vpack.c.b16 %v117, %v112
  %v199 = vunpack.c.l.b16 %v30
  %v200 = vunpack.c.l.b16 %v31
  %v201 = vunpack.c.l.b16 %v32
  %v202 = vunpack.c.l.b16 %v33
  %v203 = vunpack.c.l.b16 %v34
  %v204 = vunpack.c.l.b16 %v35
  %v205 = vunpack.c.l.b16 %v36
  %v206 = vunpack.c.l.b16 %v37
  %v207 = vunpack.c.l.b16 %v38
  %v208 = vunpack.c.l.b16 %v39
  %v209 = vunpack.c.l.b16 %v40
  %v210 = vunpack.c.l.b16 %v41
  %v211 = vunpack.c.l.b16 %v42
  %v212 = vunpack.c.l.b16 %v43
  %v213 = vunpack.c.l.b16 %v44
  %v214 = vunpack.c.l.b16 %v45
  %v215 = vunpack.c.l.b16 %v46
  %v216 = vunpack.c.l.b16 %v47
  %v217 = vunpack.c.l.b16 %v48
  %v218 = vunpack.c.l.b16 %v49
  %v219 = vunpack.c.l.b16 %v50
  %v220 = vunpack.c.l.b16 %v51
  %v221 = vunpack.c.l.b16 %v52
  %v222 = vunpack.c.l.b16 %v53
  %v223 = vunpack.c.l.b16 %v54
  %v224 = vunpack.c.l.b16 %v55
  %v225 = vunpack.c.l.b16 %v56
  %v226 = vunpack.c.l.b16 %v57
  %v227 = vunpack.c.l.b16 %v58
  %v228 = vunpack.c.l.b16 %v59
  %v229 = vunpack.c.l.b16 %v60
  %v230 = vunpack.c.l.b16 %v61
  %v231 = vunpack.c.l.b16 %v62
  %v232 = vunpack.c.l.b16 %v63
  %v233 = vunpack.c.l.b16 %v64
  %v234 = vunpack.c.l.b16 %v65
  %v235 = vunpack.c.l.b16 %v66
  %v236 = vunpack.c.l.b16 %v67
  %v237 = vunpack.c.l.b16 %v68
  %v238 = vunpack.c.l.b16 %v69
  %v239 = vunpack.c.l.b16 %v70
  %v240 = vunpack.c.l.b16 %v71
  %v241 = vunpack.c.l.b16 %v72
  %v242 = vunpack.c.l.b16 %v73
  %v243 = vunpack.c.l.b16 %v74
  %v244 = vunpack.c.l.b16 %v75
  %v245 = vunpack.c.l.b16 %v76
  %v246 = vunpack.c.l.b16 %v77
  %v247 = vunpack.c.l.b16 %v78
  %v248 = vunpack.c.l.b16 %v79
  %v249 = vunpack.c.l.b16 %v80
  %v250 = vunpack.c.l.b16 %v81
  %v251 = vunpack.c.l.b16 %v82
  %v252 = vunpack.c.l.b16 %v83
  %v253 = vunpack.c.l.b16 %v84
  %v254 = vunpack.c.l.b16 %v85
  %v255 = vunpack.c.l.b16 %v86
  %v256 = vunpack.c.l.b16 %v87
  %v257 = vunpack.c.l.b16 %v88
  %v258 = vunpack.c.l.b16 %v89
  %v259 = vunpack.c.l.b16 %v90
  %v260 = vunpack.c.l.b16 %v91
  %v261 = vunpack.c.l.b16 %v92
  %v262 = vunpack.c.l.b16 %v93
  %v263 = vunpack.c.l.b16 %v94
  %v264 = vunpack.c.l.b16 %v95
  %v265 = vunpack.c.l.b16 %v96
  %v266 = vunpack.c.l.b16 %v97
  %v267 = vunpack.c.l.b16 %v98
  %v268 = vunpack.c.l.b16 %v99
  %v269 = vunpack.c.l.b16 %v100
  %v270 = vunpack.c.l.b16 %v101
  %v271 = vpack.c.b16 %v200, %v199
  %v272 = vpack.c.b16 %v202, %v201
  %v273 = vpack.c.b16 %v204, %v203
  %v274 = vpack.c.b16 %v206, %v205
  %v275 = vpack.c.b16 %v208, %v207
  %v276 = vpack.c.b16 %v210, %v209
  %v277 = vpack.c.b16 %v212, %v211
  %v278 = vpack.c.b16 %v214, %v213
  %v279 = vpack.c.b16 %v216, %v215
  %v280 = vpack.c.b16 %v218, %v217
  %v281 = vpack.c.b16 %v220, %v219
  %v282 = vpack.c.b16 %v222, %v221
  %v283 = vpack.c.b16 %v224, %v223
  %v284 = vpack.c.b16 %v226, %v225
  %v285 = vpack.c.b16 %v228, %v227
  %v286 = vpack.c.b16 %v230, %v229
  %v287 = vpack.c.b16 %v232, %v231
  %v288 = vpack.c.b16 %v234, %v233
  %v289 = vpack.c.b16 %v236, %v235
  %v290 = vpack.c.b16 %v238, %v237
  %v291 = vpack.c.b16 %v240, %v239
  %v292 = vpack.c.b16 %v242, %v241
  %v293 = vpack.c.b16 %v244, %v243
  %v294 = vpack.c.b16 %v246, %v245
  %v295 = vpack.c.b16 %v248, %v247
  %v296 = vpack.c.b16 %v250, %v249
  %v297 = vpack.c.b16 %v252, %v251
  %v298 = vpack.c.b16 %v254, %v253
  %v299 = vpack.c.b16 %v256, %v255
  %v300 = vpack.c.b16 %v258, %v257
  %v301 = vpack.c.b16 %v260, %v259
  %v302 = vpack.c.b16 %v262, %v261
  %v303 = vpack.c.b16 %v264, %v263
  %v304 = vpack.c.b16 %v266, %v265
  %v305 = vpack.c.b16 %v268, %v267
  %v306 = vpack.c.b16 %v270, %v269
  %vm343 = vcmask 523264
  %v345 = vsel %vm343, %v122, 0
  %347 = vmatprep.subr.bf16.mxu0 0
  %348 = vmatpush1.bf16.msra.mxu0 %v271
  %349 = vmatprep.subr.bf16.mxu0 0
  %350 = vmatpush1.bf16.msra.mxu0 %v272
  %351 = vmatprep.subr.bf16.mxu0 0
  %352 = vmatpush1.bf16.msra.mxu0 %v273
  %353 = vmatprep.subr.bf16.mxu0 0
  %354 = vmatpush1.bf16.msra.mxu0 %v274
  %355 = vmatprep.subr.bf16.mxu0 0
  %356 = vmatpush1.bf16.msra.mxu0 %v275
  %357 = vmatprep.subr.bf16.mxu0 0
  %358 = vmatpush1.bf16.msra.mxu0 %v276
  %359 = vmatprep.subr.bf16.mxu0 0
  %360 = vmatpush1.bf16.msra.mxu0 %v277
  %361 = vmatprep.subr.bf16.mxu0 0
  %362 = vmatpush1.bf16.msra.mxu0 %v278
  %363 = vmatprep.subr.bf16.mxu0 0
  %364 = vmatpush1.bf16.msra.mxu0 %v279
  %365 = vmatprep.subr.bf16.mxu0 0
  %366 = vmatpush1.bf16.msra.mxu0 %v280
  %367 = vmatprep.subr.bf16.mxu0 0
  %368 = vmatpush1.bf16.msra.mxu0 %v281
  %369 = vmatprep.subr.bf16.mxu0 0
  %370 = vmatpush1.bf16.msra.mxu0 %v282
  %371 = vmatprep.subr.bf16.mxu0 0
  %372 = vmatpush1.bf16.msra.mxu0 %v283
  %373 = vmatprep.subr.bf16.mxu0 0
  %374 = vmatpush1.bf16.msra.mxu0 %v284
  %375 = vmatprep.subr.bf16.mxu0 0
  %376 = vmatpush1.bf16.msra.mxu0 %v285
  %377 = vmatprep.subr.bf16.mxu0 0
  %378 = vmatpush1.bf16.msra.mxu0 %v286
  %379 = vmatprep.mubr.bf16.mxu0 %v119
  %380 = vmatmul.mubr.bf16.gmra.mrb[0].mxu0 %v118
  %v381 = vpop.f32.mrb[0].mxu0
  %v382 = vadd.f32 0.0, %v381
  %v383 = vpop.f32.mrb[0].mxu0
  %v384 = vpop.f32.mrb[0].mxu0
  %v385 = vadd.f32 0.0, %v384
  %v386 = vpop.f32.mrb[0].mxu0
  %387 = vdwg.mxu0
  %388 = vmatprep.subr.bf16.mxu0 0
  %389 = vmatpush1.bf16.msra.mxu0 %v287
  %390 = vmatprep.subr.bf16.mxu0 0
  %391 = vmatpush1.bf16.msra.mxu0 %v288
  %392 = vmatprep.subr.bf16.mxu0 0
  %393 = vmatpush1.bf16.msra.mxu0 %v289
  %394 = vmatprep.subr.bf16.mxu0 0
  %395 = vmatpush1.bf16.msra.mxu0 %v290
  %396 = vmatprep.subr.bf16.mxu0 0
  %397 = vmatpush1.bf16.msra.mxu0 %v291
  %398 = vmatprep.subr.bf16.mxu0 0
  %399 = vmatpush1.bf16.msra.mxu0 %v292
  %400 = vmatprep.subr.bf16.mxu0 0
  %401 = vmatpush1.bf16.msra.mxu0 %v293
  %402 = vmatprep.subr.bf16.mxu0 0
  %403 = vmatpush1.bf16.msra.mxu0 %v294
  %404 = vmatprep.subr.bf16.mxu0 0
  %405 = vmatpush1.bf16.msra.mxu0 %v295
  %406 = vmatprep.subr.bf16.mxu0 0
  %407 = vmatpush1.bf16.msra.mxu0 %v296
  %408 = vmatprep.subr.bf16.mxu0 0
  %409 = vmatpush1.bf16.msra.mxu0 %v297
  %410 = vmatprep.subr.bf16.mxu0 0
  %411 = vmatpush1.bf16.msra.mxu0 %v298
  %412 = vmatprep.subr.bf16.mxu0 0
  %413 = vmatpush1.bf16.msra.mxu0 %v299
  %414 = vmatprep.subr.bf16.mxu0 0
  %415 = vmatpush1.bf16.msra.mxu0 %v300
  %416 = vmatprep.subr.bf16.mxu0 0
  %417 = vmatpush1.bf16.msra.mxu0 %v301
  %418 = vmatprep.subr.bf16.mxu0 0
  %419 = vmatpush1.bf16.msra.mxu0 %v302
  %420 = vmatprep.mubr.bf16.mxu0 %v121
  %421 = vmatmul.mubr.bf16.gmra.mrb[0].mxu0 %v120
  %v422 = vpop.f32.mrb[0].mxu0
  %v423 = vadd.f32 %v382, %v422
  %v424 = vpop.f32.mrb[0].mxu0
  %v425 = vpop.f32.mrb[0].mxu0
  %v426 = vadd.f32 %v385, %v425
  %v427 = vpop.f32.mrb[0].mxu0
  %428 = vdwg.mxu0
  %429 = vmatprep.subr.bf16.mxu0 0
  %430 = vmatpush1.bf16.msra.mxu0 %v303
  %431 = vmatprep.subr.bf16.mxu0 0
  %432 = vmatpush1.bf16.msra.mxu0 %v304
  %433 = vmatprep.subr.bf16.mxu0 0
  %434 = vmatpush1.bf16.msra.mxu0 %v305
  %435 = vmatprep.subr.bf16.mxu0 0
  %436 = vmatpush1.bf16.msra.mxu0 %v306
  %437 = vmatprep.subr.bf16.mxu0 0
  %438 = vmatpush1.bf16.msra.mxu0 0
  %439 = vmatprep.subr.bf16.mxu0 0
  %440 = vmatpush1.bf16.msra.mxu0 0
  %441 = vmatprep.subr.bf16.mxu0 0
  %442 = vmatpush1.bf16.msra.mxu0 0
  %443 = vmatprep.subr.bf16.mxu0 0
  %444 = vmatpush1.bf16.msra.mxu0 0
  %445 = vmatprep.subr.bf16.mxu0 0
  %446 = vmatpush1.bf16.msra.mxu0 0
  %447 = vmatprep.subr.bf16.mxu0 0
  %448 = vmatpush1.bf16.msra.mxu0 0
  %449 = vmatprep.subr.bf16.mxu0 0
  %450 = vmatpush1.bf16.msra.mxu0 0
  %451 = vmatprep.subr.bf16.mxu0 0
  %452 = vmatpush1.bf16.msra.mxu0 0
  %453 = vmatprep.subr.bf16.mxu0 0
  %454 = vmatpush1.bf16.msra.mxu0 0
  %455 = vmatprep.subr.bf16.mxu0 0
  %456 = vmatpush1.bf16.msra.mxu0 0
  %457 = vmatprep.subr.bf16.mxu0 0
  %458 = vmatpush1.bf16.msra.mxu0 0
  %459 = vmatprep.subr.bf16.mxu0 0
  %460 = vmatpush1.bf16.msra.mxu0 0
  %461 = vmatprep.mubr.bf16.mxu0 0
  %462 = vmatmul.mubr.bf16.gmra.mrb[0].mxu0 %v345
  %v463 = vpop.f32.mrb[0].mxu0
  %v464 = vadd.f32 %v423, %v463
  %v465 = vpop.f32.mrb[0].mxu0
  %v466 = vpop.f32.mrb[0].mxu0
  %v467 = vadd.f32 %v426, %v466
  %v468 = vpop.f32.mrb[0].mxu0
  %469 = vdwg.mxu0
  %v470 = vadd.f32 %v22, %v464
  %v471 = vadd.f32 %v23, %v467
  %472 = vst.msk [vmem:[#allocation2] sm:$0xff] %vm343, %v470
  %473 = vst.msk [vmem:[#allocation2 + $0x8] sm:$0xff] %vm343, %v471
  // Predicated region
  $region18: #{dqn_forward.6} parent=0 // pred_check
    %p474 = pneg %p15
  $region19: #{dqn_forward.6} parent=0 // pred_check_branch
    %476 = sbr.rel (%p474) target = $region21
  $region20: #{dqn_forward.6} parent=0 // pred_region
    %v477 = vld [vmem:[#allocation2] sm:$0xff]
    %v478 = vld [vmem:[#allocation2 + $0x8] sm:$0xff]
    %v479 = vld [vmem:[%s2] sm:$0x1]
    %v481 = vlaneseq
    %v482 = vshrl.u32 %v481, 7
    %v483 = vsub.s32 0, %v482
    %v484 = vrot.slane %v479, %v483
    %v486 = vadd.f32 %v477, %v484
    %v487 = vadd.f32 %v478, %v484
    %v488 = vmax.f32 %v486, 0.0
    %v489 = vmax.f32 %v487, 0.0
    %v490 = vpack.c.bf16 %v489, %v488
    %v492 = vunpack.c.l.b16 %v490
    %v493 = vunpack.c.h.b16 %v490
    %v494 = vpack.c.b16 %v492, %v492
    %v495 = vpack.c.b16 %v493, %v493
    %vm498 = vcmask 519168
    %499 = vst.msk [vmem:[%s3] sm:$0xf] %vm498, %v494
    %500 = vst.msk [vmem:[%s3 + $0x4] sm:$0xf] %vm498, %v495
  $region21: #{dqn_forward.6} parent=0 // pred_fallthru
    _
  // Predicated region
  $region22: #{dqn_forward.6} parent=0 // pred_check
    _
  $region23: #{dqn_forward.6} parent=0 // pred_check_branch
    %502 = sbr.rel (0) target = $region25
  $region24: #{dqn_forward.6} parent=0 // pred_region
    _
  $region25: #{dqn_forward.6} parent=0 // pred_fallthru
    _
  // Predicated region
  $region26: #{dqn_forward.6} parent=0 // pred_check
    _
  $region27: #{dqn_forward.6} parent=0 // pred_check_branch
    %504 = sbr.rel (0) target = $region29
  $region28: #{dqn_forward.6} parent=0 // pred_region
    _
  $region29: #{dqn_forward.6} parent=0 // pred_fallthru
    _

// kernel: dqn_forward.7
$region0: #{dqn_forward.7}
  #allocation0 [shape = 'u32[]', space=smem, size = 0x4, offset = 0x4, fixed_abs, tag = 'smem constant byte address 0x4 - core index']
  #allocation1 [shape = 'u32[144,128]{1,0:T(1,128)}', space=vmem, size = 0x12000, scoped, tag = 'internal scratch']
  #allocation2 [shape = 'f32[16,512]{1,0:T(8,128)}', space=vmem, size = 0x8000, scoped, tag = 'scratch operand']
  %s0 = inlined_call_operand.vmem [shape: bf16[16,64], index: 0, kind: input, shape index: {}]
  %s1 = inlined_call_operand.vmem [shape: bf16[64,512], index: 1, kind: input, shape index: {}]
  %s2 = inlined_call_operand.vmem [shape: f32[1,512], index: 2, kind: input, shape index: {}]
  %s3 = inlined_call_operand.vmem [shape: bf16[512,128], index: 3, kind: input, shape index: {}]
  %s4 = inlined_call_operand.vmem [shape: f32[1,128], index: 4, kind: input, shape index: {}]
  %s5 = inlined_call_operand.vmem [shape: f32[16,128], index: 5, kind: output, shape index: {}]
  %s6 = sld [smem:[#allocation0]]
  $region38: #{dqn_forward.7} parent=0
    _
  %s8 = ssub.s32 1, %s6
  %s9 = scalar_select 0, %s8, %s6
  // Predicated region
  $region2: #{dqn_forward.7} parent=0 // pred_check
    _
  $region3: #{dqn_forward.7} parent=0 // pred_check_branch
    %11 = sbr.rel (0) target = $region5
  $region4: #{dqn_forward.7} parent=0 // pred_region
    _
  $region5: #{dqn_forward.7} parent=0 // pred_fallthru
    _
  // Predicated region
  $region6: #{dqn_forward.7} parent=0 // pred_check
    _
  $region7: #{dqn_forward.7} parent=0 // pred_check_branch
    %13 = sbr.rel (0) target = $region9
  $region8: #{dqn_forward.7} parent=0 // pred_region
    _
  $region9: #{dqn_forward.7} parent=0 // pred_fallthru
    _
  // Predicated region
  $region10: #{dqn_forward.7} parent=0 // pred_check
    _
  $region11: #{dqn_forward.7} parent=0 // pred_check_branch
    %15 = sbr.rel (0) target = $region13
  $region12: #{dqn_forward.7} parent=0 // pred_region
    _
  $region13: #{dqn_forward.7} parent=0 // pred_fallthru
    _
  // Predicated region
  $region14: #{dqn_forward.7} parent=0 // pred_check
    _
  $region15: #{dqn_forward.7} parent=0 // pred_check_branch
    %17 = sbr.rel (0) target = $region17
  $region16: #{dqn_forward.7} parent=0 // pred_region
    _
  $region17: #{dqn_forward.7} parent=0 // pred_fallthru
    _
  // Predicated region
  $region18: #{dqn_forward.7} parent=0 // pred_check
    _
  $region19: #{dqn_forward.7} parent=0 // pred_check_branch
    %19 = sbr.rel (0) target = $region21
  $region20: #{dqn_forward.7} parent=0 // pred_region
    _
  $region21: #{dqn_forward.7} parent=0 // pred_fallthru
    _
  %p21 = scmp.eq.s32.totalorder 0, 0
  // Predicated region
  $region22: #{dqn_forward.7} parent=0 // pred_check
    %p22 = pneg %p21
  $region23: #{dqn_forward.7} parent=0 // pred_check_branch
    %24 = sbr.rel (%p22) target = $region25
  $region24: #{dqn_forward.7} parent=0 // pred_region
    %25 = vst [vmem:[#allocation2] sm:$0xff] 0.0
    %26 = vst [vmem:[#allocation2 + $0x8] sm:$0xff] 0.0
    %27 = vst [vmem:[#allocation2 + $0x10] sm:$0xff] 0.0
    %28 = vst [vmem:[#allocation2 + $0x18] sm:$0xff] 0.0
    %29 = vst [vmem:[#allocation2 + $0x20] sm:$0xff] 0.0
    %30 = vst [vmem:[#allocation2 + $0x28] sm:$0xff] 0.0
    %31 = vst [vmem:[#allocation2 + $0x30] sm:$0xff] 0.0
    %32 = vst [vmem:[#allocation2 + $0x38] sm:$0xff] 0.0
  $region25: #{dqn_forward.7} parent=0 // pred_fallthru
    _
  %v33 = vld [vmem:[#allocation2] sm:$0xff]
  %v34 = vld [vmem:[#allocation2 + $0x8] sm:$0xff]
  %v35 = vld [vmem:[#allocation2 + $0x10] sm:$0xff]
  %v36 = vld [vmem:[#allocation2 + $0x18] sm:$0xff]
  %v37 = vld [vmem:[#allocation2 + $0x20] sm:$0xff]
  %v38 = vld [vmem:[#allocation2 + $0x28] sm:$0xff]
  %v39 = vld [vmem:[#allocation2 + $0x30] sm:$0xff]
  %v40 = vld [vmem:[#allocation2 + $0x38] sm:$0xff]
  %v41 = vld [vmem:[%s0] sm:$0xf]
  %v42 = vld [vmem:[%s0 + $0x4] sm:$0xf]
  %v43 = vld [vmem:[%s1] sm:$0xff]
  %v44 = vld [vmem:[%s1 + $0x8] sm:$0xff]
  %v45 = vld [vmem:[%s1 + $0x10] sm:$0xff]
  %v46 = vld [vmem:[%s1 + $0x18] sm:$0xff]
  %v47 = vld [vmem:[%s1 + $0x20] sm:$0xff]
  %v48 = vld [vmem:[%s1 + $0x28] sm:$0xff]
  %v49 = vld [vmem:[%s1 + $0x30] sm:$0xff]
  %v50 = vld [vmem:[%s1 + $0x38] sm:$0xff]
  %v51 = vld [vmem:[%s1 + $0x40] sm:$0xff]
  %v52 = vld [vmem:[%s1 + $0x48] sm:$0xff]
  %v53 = vld [vmem:[%s1 + $0x50] sm:$0xff]
  %v54 = vld [vmem:[%s1 + $0x58] sm:$0xff]
  %v55 = vld [vmem:[%s1 + $0x60] sm:$0xff]
  %v56 = vld [vmem:[%s1 + $0x68] sm:$0xff]
  %v57 = vld [vmem:[%s1 + $0x70] sm:$0xff]
  %v58 = vld [vmem:[%s1 + $0x78] sm:$0xff]
  %v61 = vunpack.c.l.b16 %v41
  %v62 = vunpack.c.l.b16 %v42
  %v63 = vpack.c.b16 %v62, %v61
  %v80 = vunpack.c.l.b16 %v43
  %v81 = vunpack.c.h.b16 %v43
  %v82 = vunpack.c.l.b16 %v44
  %v83 = vunpack.c.h.b16 %v44
  %v84 = vunpack.c.l.b16 %v45
  %v85 = vunpack.c.h.b16 %v45
  %v86 = vunpack.c.l.b16 %v46
  %v87 = vunpack.c.h.b16 %v46
  %v88 = vunpack.c.l.b16 %v47
  %v89 = vunpack.c.h.b16 %v47
  %v90 = vunpack.c.l.b16 %v48
  %v91 = vunpack.c.h.b16 %v48
  %v92 = vunpack.c.l.b16 %v49
  %v93 = vunpack.c.h.b16 %v49
  %v94 = vunpack.c.l.b16 %v50
  %v95 = vunpack.c.h.b16 %v50
  %v96 = vunpack.c.l.b16 %v51
  %v97 = vunpack.c.h.b16 %v51
  %v98 = vunpack.c.l.b16 %v52
  %v99 = vunpack.c.h.b16 %v52
  %v100 = vunpack.c.l.b16 %v53
  %v101 = vunpack.c.h.b16 %v53
  %v102 = vunpack.c.l.b16 %v54
  %v103 = vunpack.c.h.b16 %v54
  %v104 = vunpack.c.l.b16 %v55
  %v105 = vunpack.c.h.b16 %v55
  %v106 = vunpack.c.l.b16 %v56
  %v107 = vunpack.c.h.b16 %v56
  %v108 = vunpack.c.l.b16 %v57
  %v109 = vunpack.c.h.b16 %v57
  %v110 = vunpack.c.l.b16 %v58
  %v111 = vunpack.c.h.b16 %v58
  %v112 = vpack.c.b16 %v84, %v80
  %v113 = vpack.c.b16 %v85, %v81
  %v114 = vpack.c.b16 %v86, %v82
  %v115 = vpack.c.b16 %v87, %v83
  %v116 = vpack.c.b16 %v92, %v88
  %v117 = vpack.c.b16 %v93, %v89
  %v118 = vpack.c.b16 %v94, %v90
  %v119 = vpack.c.b16 %v95, %v91
  %v120 = vpack.c.b16 %v100, %v96
  %v121 = vpack.c.b16 %v101, %v97
  %v122 = vpack.c.b16 %v102, %v98
  %v123 = vpack.c.b16 %v103, %v99
  %v124 = vpack.c.b16 %v108, %v104
  %v125 = vpack.c.b16 %v109, %v105
  %v126 = vpack.c.b16 %v110, %v106
  %v127 = vpack.c.b16 %v111, %v107
  %vm144 = vcmask 523264
  %v146 = vsel %vm144, %v63, 0
  %148 = vmatprep.subr.bf16.mxu0 %v113
  %149 = vmatpush1.bf16.msra.mxu0 %v112
  %150 = vmatprep.subr.bf16.mxu0 %v117
  %151 = vmatpush1.bf16.msra.mxu0 %v116
  %152 = vmatprep.subr.bf16.mxu0 %v121
  %153 = vmatpush1.bf16.msra.mxu0 %v120
  %154 = vmatprep.subr.bf16.mxu0 %v125
  %155 = vmatpush1.bf16.msra.mxu0 %v124
  %156 = vmatprep.subr.bf16.mxu0 0
  %157 = vmatpush1.bf16.msra.mxu0 0
  %158 = vmatprep.subr.bf16.mxu0 0
  %159 = vmatpush1.bf16.msra.mxu0 0
  %160 = vmatprep.subr.bf16.mxu0 0
  %161 = vmatpush1.bf16.msra.mxu0 0
  %162 = vmatprep.subr.bf16.mxu0 0
  %163 = vmatpush1.bf16.msra.mxu0 0
  %164 = vmatprep.subr.bf16.mxu0 0
  %165 = vmatpush1.bf16.msra.mxu0 0
  %166 = vmatprep.subr.bf16.mxu0 0
  %167 = vmatpush1.bf16.msra.mxu0 0
  %168 = vmatprep.subr.bf16.mxu0 0
  %169 = vmatpush1.bf16.msra.mxu0 0
  %170 = vmatprep.subr.bf16.mxu0 0
  %171 = vmatpush1.bf16.msra.mxu0 0
  %172 = vmatprep.subr.bf16.mxu0 0
  %173 = vmatpush1.bf16.msra.mxu0 0
  %174 = vmatprep.subr.bf16.mxu0 0
  %175 = vmatpush1.bf16.msra.mxu0 0
  %176 = vmatprep.subr.bf16.mxu0 0
  %177 = vmatpush1.bf16.msra.mxu0 0
  %178 = vmatprep.subr.bf16.mxu0 0
  %179 = vmatpush1.bf16.msra.mxu0 0
  %180 = vmatprep.mubr.bf16.mxu0 0
  %181 = vmatmul.mubr.bf16.gmra.mrb[0].mxu0 %v146
  %v182 = vpop.f32.mrb[0].mxu0
  %v183 = vadd.f32 0.0, %v182
  %v184 = vpop.f32.mrb[0].mxu0
  %v185 = vadd.f32 0.0, %v184
  %v186 = vpop.f32.mrb[0].mxu0
  %v187 = vadd.f32 0.0, %v186
  %v188 = vpop.f32.mrb[0].mxu0
  %v189 = vadd.f32 0.0, %v188
  %190 = vdwg.mxu0
  %191 = vmatprep.subr.bf16.mxu0 %v115
  %192 = vmatpush1.bf16.msra.mxu0 %v114
  %193 = vmatprep.subr.bf16.mxu0 %v119
  %194 = vmatpush1.bf16.msra.mxu0 %v118
  %195 = vmatprep.subr.bf16.mxu0 %v123
  %196 = vmatpush1.bf16.msra.mxu0 %v122
  %197 = vmatprep.subr.bf16.mxu0 %v127
  %198 = vmatpush1.bf16.msra.mxu0 %v126
  %199 = vmatprep.subr.bf16.mxu0 0
  %200 = vmatpush1.bf16.msra.mxu0 0
  %201 = vmatprep.subr.bf16.mxu0 0
  %202 = vmatpush1.bf16.msra.mxu0 0
  %203 = vmatprep.subr.bf16.mxu0 0
  %204 = vmatpush1.bf16.msra.mxu0 0
  %205 = vmatprep.subr.bf16.mxu0 0
  %206 = vmatpush1.bf16.msra.mxu0 0
  %207 = vmatprep.subr.bf16.mxu0 0
  %208 = vmatpush1.bf16.msra.mxu0 0
  %209 = vmatprep.subr.bf16.mxu0 0
  %210 = vmatpush1.bf16.msra.mxu0 0
  %211 = vmatprep.subr.bf16.mxu0 0
  %212 = vmatpush1.bf16.msra.mxu0 0
  %213 = vmatprep.subr.bf16.mxu0 0
  %214 = vmatpush1.bf16.msra.mxu0 0
  %215 = vmatprep.subr.bf16.mxu0 0
  %216 = vmatpush1.bf16.msra.mxu0 0
  %217 = vmatprep.subr.bf16.mxu0 0
  %218 = vmatpush1.bf16.msra.mxu0 0
  %219 = vmatprep.subr.bf16.mxu0 0
  %220 = vmatpush1.bf16.msra.mxu0 0
  %221 = vmatprep.subr.bf16.mxu0 0
  %222 = vmatpush1.bf16.msra.mxu0 0
  %223 = vmatprep.mubr.bf16.mxu0 0
  %224 = vmatmul.mubr.bf16.gmra.mrb[0].mxu0 %v146
  %v225 = vpop.f32.mrb[0].mxu0
  %v226 = vadd.f32 0.0, %v225
  %v227 = vpop.f32.mrb[0].mxu0
  %v228 = vadd.f32 0.0, %v227
  %v229 = vpop.f32.mrb[0].mxu0
  %v230 = vadd.f32 0.0, %v229
  %v231 = vpop.f32.mrb[0].mxu0
  %v232 = vadd.f32 0.0, %v231
  %233 = vdwg.mxu0
  %v234 = vadd.f32 %v33, %v183
  %v235 = vadd.f32 %v34, %v185
  %v236 = vadd.f32 %v35, %v226
  %v237 = vadd.f32 %v36, %v228
  %v238 = vadd.f32 %v37, %v187
  %v239 = vadd.f32 %v38, %v189
  %v240 = vadd.f32 %v39, %v230
  %v241 = vadd.f32 %v40, %v232
  %242 = vst [vmem:[#allocation2] sm:$0xff] %v234
  %243 = vst [vmem:[#allocation2 + $0x8] sm:$0xff] %v235
  %244 = vst [vmem:[#allocation2 + $0x10] sm:$0xff] %v236
  %245 = vst [vmem:[#allocation2 + $0x18] sm:$0xff] %v237
  %246 = vst [vmem:[#allocation2 + $0x20] sm:$0xff] %v238
  %247 = vst [vmem:[#allocation2 + $0x28] sm:$0xff] %v239
  %248 = vst [vmem:[#allocation2 + $0x30] sm:$0xff] %v240
  %249 = vst [vmem:[#allocation2 + $0x38] sm:$0xff] %v241
  // Predicated region
  $region26: #{dqn_forward.7} parent=0 // pred_check
    %p250 = pneg %p21
  $region27: #{dqn_forward.7} parent=0 // pred_check_branch
    %252 = sbr.rel (%p250) target = $region29
  $region28: #{dqn_forward.7} parent=0 // pred_region
    %v253 = vld [vmem:[#allocation2] sm:$0xff]
    %v254 = vld [vmem:[#allocation2 + $0x8] sm:$0xff]
    %v255 = vld [vmem:[#allocation2 + $0x10] sm:$0xff]
    %v256 = vld [vmem:[#allocation2 + $0x18] sm:$0xff]
    %v257 = vld [vmem:[#allocation2 + $0x20] sm:$0xff]
    %v258 = vld [vmem:[#allocation2 + $0x28] sm:$0xff]
    %v259 = vld [vmem:[#allocation2 + $0x30] sm:$0xff]
    %v260 = vld [vmem:[#allocation2 + $0x38] sm:$0xff]
    %v261 = vld [vmem:[%s2] sm:$0xf]
    %v263 = vlaneseq
    %v264 = vshrl.u32 %v263, 7
    %v265 = vsub.s32 0, %v264
    %v266 = vrot.slane %v261, %v265
    %v267 = vlaneseq
    %v268 = vshrl.u32 %v267, 7
    %v269 = vsub.s32 1, %v268
    %v270 = vrot.slane %v261, %v269
    %v271 = vlaneseq
    %v272 = vshrl.u32 %v271, 7
    %v273 = vsub.s32 2, %v272
    %v274 = vrot.slane %v261, %v273
    %v275 = vlaneseq
    %v276 = vshrl.u32 %v275, 7
    %v277 = vsub.s32 3, %v276
    %v278 = vrot.slane %v261, %v277
    %v283 = vadd.f32 %v253, %v266
    %v284 = vadd.f32 %v254, %v270
    %v285 = vadd.f32 %v255, %v274
    %v286 = vadd.f32 %v256, %v278
    %v287 = vadd.f32 %v257, %v266
    %v288 = vadd.f32 %v258, %v270
    %v289 = vadd.f32 %v259, %v274
    %v290 = vadd.f32 %v260, %v278
    %v291 = vmax.f32 %v283, 0.0
    %v292 = vmax.f32 %v284, 0.0
    %v293 = vmax.f32 %v285, 0.0
    %v294 = vmax.f32 %v286, 0.0
    %v295 = vmax.f32 %v287, 0.0
    %v296 = vmax.f32 %v288, 0.0
    %v297 = vmax.f32 %v289, 0.0
    %v298 = vmax.f32 %v290, 0.0
    %v299 = vpack.c.bf16 %v295, %v291
    %v300 = vpack.c.bf16 %v296, %v292
    %v301 = vpack.c.bf16 %v297, %v293
    %v302 = vpack.c.bf16 %v298, %v294
    %v303 = vld [vmem:[%s3] sm:$0xf]
    %v304 = vld [vmem:[%s3 + $0x4] sm:$0xf]
    %v305 = vld [vmem:[%s3 + $0x8] sm:$0xf]
    %v306 = vld [vmem:[%s3 + $0xc] sm:$0xf]
    %v307 = vld [vmem:[%s3 + $0x10] sm:$0xf]
    %v308 = vld [vmem:[%s3 + $0x14] sm:$0xf]
    %v309 = vld [vmem:[%s3 + $0x18] sm:$0xf]
    %v310 = vld [vmem:[%s3 + $0x1c] sm:$0xf]
    %v311 = vld [vmem:[%s3 + $0x20] sm:$0xf]
    %v312 = vld [vmem:[%s3 + $0x24] sm:$0xf]
    %v313 = vld [vmem:[%s3 + $0x28] sm:$0xf]
    %v314 = vld [vmem:[%s3 + $0x2c] sm:$0xf]
    %v315 = vld [vmem:[%s3 + $0x30] sm:$0xf]
    %v316 = vld [vmem:[%s3 + $0x34] sm:$0xf]
    %v317 = vld [vmem:[%s3 + $0x38] sm:$0xf]
    %v318 = vld [vmem:[%s3 + $0x3c] sm:$0xf]
    %v319 = vld [vmem:[%s3 + $0x40] sm:$0xf]
    %v320 = vld [vmem:[%s3 + $0x44] sm:$0xf]
    %v321 = vld [vmem:[%s3 + $0x48] sm:$0xf]
    %v322 = vld [vmem:[%s3 + $0x4c] sm:$0xf]
    %v323 = vld [vmem:[%s3 + $0x50] sm:$0xf]
    %v324 = vld [vmem:[%s3 + $0x54] sm:$0xf]
    %v325 = vld [vmem:[%s3 + $0x58] sm:$0xf]
    %v326 = vld [vmem:[%s3 + $0x5c] sm:$0xf]
    %v327 = vld [vmem:[%s3 + $0x60] sm:$0xf]
    %v328 = vld [vmem:[%s3 + $0x64] sm:$0xf]
    %v329 = vld [vmem:[%s3 + $0x68] sm:$0xf]
    %v330 = vld [vmem:[%s3 + $0x6c] sm:$0xf]
    %v331 = vld [vmem:[%s3 + $0x70] sm:$0xf]
    %v332 = vld [vmem:[%s3 + $0x74] sm:$0xf]
    %v333 = vld [vmem:[%s3 + $0x78] sm:$0xf]
    %v334 = vld [vmem:[%s3 + $0x7c] sm:$0xf]
    %v335 = vld [vmem:[%s3 + $0x80] sm:$0xf]
    %v336 = vld [vmem:[%s3 + $0x84] sm:$0xf]
    %v337 = vld [vmem:[%s3 + $0x88] sm:$0xf]
    %v338 = vld [vmem:[%s3 + $0x8c] sm:$0xf]
    %v339 = vld [vmem:[%s3 + $0x90] sm:$0xf]
    %v340 = vld [vmem:[%s3 + $0x94] sm:$0xf]
    %v341 = vld [vmem:[%s3 + $0x98] sm:$0xf]
    %v342 = vld [vmem:[%s3 + $0x9c] sm:$0xf]
    %v343 = vld [vmem:[%s3 + $0xa0] sm:$0xf]
    %v344 = vld [vmem:[%s3 + $0xa4] sm:$0xf]
    %v345 = vld [vmem:[%s3 + $0xa8] sm:$0xf]
    %v346 = vld [vmem:[%s3 + $0xac] sm:$0xf]
    %v347 = vld [vmem:[%s3 + $0xb0] sm:$0xf]
    %v348 = vld [vmem:[%s3 + $0xb4] sm:$0xf]
    %v349 = vld [vmem:[%s3 + $0xb8] sm:$0xf]
    %v350 = vld [vmem:[%s3 + $0xbc] sm:$0xf]
    %v351 = vld [vmem:[%s3 + $0xc0] sm:$0xf]
    %v352 = vld [vmem:[%s3 + $0xc4] sm:$0xf]
    %v353 = vld [vmem:[%s3 + $0xc8] sm:$0xf]
    %v354 = vld [vmem:[%s3 + $0xcc] sm:$0xf]
    %v355 = vld [vmem:[%s3 + $0xd0] sm:$0xf]
    %v356 = vld [vmem:[%s3 + $0xd4] sm:$0xf]
    %v357 = vld [vmem:[%s3 + $0xd8] sm:$0xf]
    %v358 = vld [vmem:[%s3 + $0xdc] sm:$0xf]
    %v359 = vld [vmem:[%s3 + $0xe0] sm:$0xf]
    %v360 = vld [vmem:[%s3 + $0xe4] sm:$0xf]
    %v361 = vld [vmem:[%s3 + $0xe8] sm:$0xf]
    %v362 = vld [vmem:[%s3 + $0xec] sm:$0xf]
    %v363 = vld [vmem:[%s3 + $0xf0] sm:$0xf]
    %v364 = vld [vmem:[%s3 + $0xf4] sm:$0xf]
    %v365 = vld [vmem:[%s3 + $0xf8] sm:$0xf]
    %v366 = vld [vmem:[%s3 + $0xfc] sm:$0xf]
    %v367 = vld [vmem:[%s4] sm:$0x1]
    %v369 = vlaneseq
    %v370 = vshrl.u32 %v369, 7
    %v371 = vsub.s32 0, %v370
    %v372 = vrot.slane %v367, %v371
    %v438 = vunpack.c.l.b16 %v303
    %v439 = vunpack.c.l.b16 %v304
    %v440 = vunpack.c.l.b16 %v305
    %v441 = vunpack.c.l.b16 %v306
    %v442 = vunpack.c.l.b16 %v307
    %v443 = vunpack.c.l.b16 %v308
    %v444 = vunpack.c.l.b16 %v309
    %v445 = vunpack.c.l.b16 %v310
    %v446 = vunpack.c.l.b16 %v311
    %v447 = vunpack.c.l.b16 %v312
    %v448 = vunpack.c.l.b16 %v313
    %v449 = vunpack.c.l.b16 %v314
    %v450 = vunpack.c.l.b16 %v315
    %v451 = vunpack.c.l.b16 %v316
    %v452 = vunpack.c.l.b16 %v317
    %v453 = vunpack.c.l.b16 %v318
    %v454 = vunpack.c.l.b16 %v319
    %v455 = vunpack.c.l.b16 %v320
    %v456 = vunpack.c.l.b16 %v321
    %v457 = vunpack.c.l.b16 %v322
    %v458 = vunpack.c.l.b16 %v323
    %v459 = vunpack.c.l.b16 %v324
    %v460 = vunpack.c.l.b16 %v325
    %v461 = vunpack.c.l.b16 %v326
    %v462 = vunpack.c.l.b16 %v327
    %v463 = vunpack.c.l.b16 %v328
    %v464 = vunpack.c.l.b16 %v329
    %v465 = vunpack.c.l.b16 %v330
    %v466 = vunpack.c.l.b16 %v331
    %v467 = vunpack.c.l.b16 %v332
    %v468 = vunpack.c.l.b16 %v333
    %v469 = vunpack.c.l.b16 %v334
    %v470 = vunpack.c.l.b16 %v335
    %v471 = vunpack.c.l.b16 %v336
    %v472 = vunpack.c.l.b16 %v337
    %v473 = vunpack.c.l.b16 %v338
    %v474 = vunpack.c.l.b16 %v339
    %v475 = vunpack.c.l.b16 %v340
    %v476 = vunpack.c.l.b16 %v341
    %v477 = vunpack.c.l.b16 %v342
    %v478 = vunpack.c.l.b16 %v343
    %v479 = vunpack.c.l.b16 %v344
    %v480 = vunpack.c.l.b16 %v345
    %v481 = vunpack.c.l.b16 %v346
    %v482 = vunpack.c.l.b16 %v347
    %v483 = vunpack.c.l.b16 %v348
    %v484 = vunpack.c.l.b16 %v349
    %v485 = vunpack.c.l.b16 %v350
    %v486 = vunpack.c.l.b16 %v351
    %v487 = vunpack.c.l.b16 %v352
    %v488 = vunpack.c.l.b16 %v353
    %v489 = vunpack.c.l.b16 %v354
    %v490 = vunpack.c.l.b16 %v355
    %v491 = vunpack.c.l.b16 %v356
    %v492 = vunpack.c.l.b16 %v357
    %v493 = vunpack.c.l.b16 %v358
    %v494 = vunpack.c.l.b16 %v359
    %v495 = vunpack.c.l.b16 %v360
    %v496 = vunpack.c.l.b16 %v361
    %v497 = vunpack.c.l.b16 %v362
    %v498 = vunpack.c.l.b16 %v363
    %v499 = vunpack.c.l.b16 %v364
    %v500 = vunpack.c.l.b16 %v365
    %v501 = vunpack.c.l.b16 %v366
    %v502 = vpack.c.b16 %v439, %v438
    %v503 = vpack.c.b16 %v441, %v440
    %v504 = vpack.c.b16 %v443, %v442
    %v505 = vpack.c.b16 %v445, %v444
    %v506 = vpack.c.b16 %v447, %v446
    %v507 = vpack.c.b16 %v449, %v448
    %v508 = vpack.c.b16 %v451, %v450
    %v509 = vpack.c.b16 %v453, %v452
    %v510 = vpack.c.b16 %v455, %v454
    %v511 = vpack.c.b16 %v457, %v456
    %v512 = vpack.c.b16 %v459, %v458
    %v513 = vpack.c.b16 %v461, %v460
    %v514 = vpack.c.b16 %v463, %v462
    %v515 = vpack.c.b16 %v465, %v464
    %v516 = vpack.c.b16 %v467, %v466
    %v517 = vpack.c.b16 %v469, %v468
    %v518 = vpack.c.b16 %v471, %v470
    %v519 = vpack.c.b16 %v473, %v472
    %v520 = vpack.c.b16 %v475, %v474
    %v521 = vpack.c.b16 %v477, %v476
    %v522 = vpack.c.b16 %v479, %v478
    %v523 = vpack.c.b16 %v481, %v480
    %v524 = vpack.c.b16 %v483, %v482
    %v525 = vpack.c.b16 %v485, %v484
    %v526 = vpack.c.b16 %v487, %v486
    %v527 = vpack.c.b16 %v489, %v488
    %v528 = vpack.c.b16 %v491, %v490
    %v529 = vpack.c.b16 %v493, %v492
    %v530 = vpack.c.b16 %v495, %v494
    %v531 = vpack.c.b16 %v497, %v496
    %v532 = vpack.c.b16 %v499, %v498
    %v533 = vpack.c.b16 %v501, %v500
    %566 = vmatprep.subr.bf16.mxu0 0
    %567 = vmatpush1.bf16.msra.mxu0 %v502
    %568 = vmatprep.subr.bf16.mxu0 0
    %569 = vmatpush1.bf16.msra.mxu0 %v503
    %570 = vmatprep.subr.bf16.mxu0 0
    %571 = vmatpush1.bf16.msra.mxu0 %v504
    %572 = vmatprep.subr.bf16.mxu0 0
    %573 = vmatpush1.bf16.msra.mxu0 %v505
    %574 = vmatprep.subr.bf16.mxu0 0
    %575 = vmatpush1.bf16.msra.mxu0 %v506
    %576 = vmatprep.subr.bf16.mxu0 0
    %577 = vmatpush1.bf16.msra.mxu0 %v507
    %578 = vmatprep.subr.bf16.mxu0 0
    %579 = vmatpush1.bf16.msra.mxu0 %v508
    %580 = vmatprep.subr.bf16.mxu0 0
    %581 = vmatpush1.bf16.msra.mxu0 %v509
    %582 = vmatprep.subr.bf16.mxu0 0
    %583 = vmatpush1.bf16.msra.mxu0 %v510
    %584 = vmatprep.subr.bf16.mxu0 0
    %585 = vmatpush1.bf16.msra.mxu0 %v511
    %586 = vmatprep.subr.bf16.mxu0 0
    %587 = vmatpush1.bf16.msra.mxu0 %v512
    %588 = vmatprep.subr.bf16.mxu0 0
    %589 = vmatpush1.bf16.msra.mxu0 %v513
    %590 = vmatprep.subr.bf16.mxu0 0
    %591 = vmatpush1.bf16.msra.mxu0 %v514
    %592 = vmatprep.subr.bf16.mxu0 0
    %593 = vmatpush1.bf16.msra.mxu0 %v515
    %594 = vmatprep.subr.bf16.mxu0 0
    %595 = vmatpush1.bf16.msra.mxu0 %v516
    %596 = vmatprep.subr.bf16.mxu0 0
    %597 = vmatpush1.bf16.msra.mxu0 %v517
    %598 = vmatprep.mubr.bf16.mxu0 %v300
    %599 = vmatmul.mubr.bf16.gmra.mrb[0].mxu0 %v299
    %v600 = vpop.f32.mrb[0].mxu0
    %v601 = vadd.f32 %v372, %v600
    %v602 = vpop.f32.mrb[0].mxu0
    %v603 = vpop.f32.mrb[0].mxu0
    %v604 = vadd.f32 %v372, %v603
    %v605 = vpop.f32.mrb[0].mxu0
    %606 = vdwg.mxu0
    %607 = vmatprep.subr.bf16.mxu0 0
    %608 = vmatpush1.bf16.msra.mxu0 %v518
    %609 = vmatprep.subr.bf16.mxu0 0
    %610 = vmatpush1.bf16.msra.mxu0 %v519
    %611 = vmatprep.subr.bf16.mxu0 0
    %612 = vmatpush1.bf16.msra.mxu0 %v520
    %613 = vmatprep.subr.bf16.mxu0 0
    %614 = vmatpush1.bf16.msra.mxu0 %v521
    %615 = vmatprep.subr.bf16.mxu0 0
    %616 = vmatpush1.bf16.msra.mxu0 %v522
    %617 = vmatprep.subr.bf16.mxu0 0
    %618 = vmatpush1.bf16.msra.mxu0 %v523
    %619 = vmatprep.subr.bf16.mxu0 0
    %620 = vmatpush1.bf16.msra.mxu0 %v524
    %621 = vmatprep.subr.bf16.mxu0 0
    %622 = vmatpush1.bf16.msra.mxu0 %v525
    %623 = vmatprep.subr.bf16.mxu0 0
    %624 = vmatpush1.bf16.msra.mxu0 %v526
    %625 = vmatprep.subr.bf16.mxu0 0
    %626 = vmatpush1.bf16.msra.mxu0 %v527
    %627 = vmatprep.subr.bf16.mxu0 0
    %628 = vmatpush1.bf16.msra.mxu0 %v528
    %629 = vmatprep.subr.bf16.mxu0 0
    %630 = vmatpush1.bf16.msra.mxu0 %v529
    %631 = vmatprep.subr.bf16.mxu0 0
    %632 = vmatpush1.bf16.msra.mxu0 %v530
    %633 = vmatprep.subr.bf16.mxu0 0
    %634 = vmatpush1.bf16.msra.mxu0 %v531
    %635 = vmatprep.subr.bf16.mxu0 0
    %636 = vmatpush1.bf16.msra.mxu0 %v532
    %637 = vmatprep.subr.bf16.mxu0 0
    %638 = vmatpush1.bf16.msra.mxu0 %v533
    %639 = vmatprep.mubr.bf16.mxu0 %v302
    %640 = vmatmul.mubr.bf16.gmra.mrb[0].mxu0 %v301
    %v641 = vpop.f32.mrb[0].mxu0
    %v642 = vadd.f32 %v601, %v641
    %v643 = vpop.f32.mrb[0].mxu0
    %v644 = vpop.f32.mrb[0].mxu0
    %v645 = vadd.f32 %v604, %v644
    %v646 = vpop.f32.mrb[0].mxu0
    %647 = vdwg.mxu0
    %648 = vst [vmem:[%s5] sm:$0xff] %v642
    %649 = vst [vmem:[%s5 + $0x8] sm:$0xff] %v645
  $region29: #{dqn_forward.7} parent=0 // pred_fallthru
    _
  // Predicated region
  $region30: #{dqn_forward.7} parent=0 // pred_check
    _
  $region31: #{dqn_forward.7} parent=0 // pred_check_branch
    %651 = sbr.rel (0) target = $region33
  $region32: #{dqn_forward.7} parent=0 // pred_region
    _
  $region33: #{dqn_forward.7} parent=0 // pred_fallthru
    _
  // Predicated region
  $region34: #{dqn_forward.7} parent=0 // pred_check
    _
  $region35: #{dqn_forward.7} parent=0 // pred_check_branch
    %653 = sbr.rel (0) target = $region37
  $region36: #{dqn_forward.7} parent=0 // pred_region
    _
  $region37: #{dqn_forward.7} parent=0 // pred_fallthru
    _

</llo_original>
